<compile_context>
chip_gen: v6e
topology: v6e:2x2x1
jax: 0.10.0
libtpu: 0.0.40
codegen_flags: <defaults>
</compile_context>

<pallas_src>
import functools

import jax
import jax.numpy as jnp
from jax.experimental import pallas as pl
from jax.experimental.pallas import tpu as pltpu


def _round_up(n, m=128):
    return ((n + m - 1) // m) * m


def _pad_to(a, shape):
    return jnp.pad(a, [(0, s - d) for d, s in zip(a.shape, shape)])


def _pick_tb(batch):
    """Fattest batch tile that still leaves >= 2 grid steps (one per v7x TC),
    preferring 256+ rows to fill the 256-wide MXU on v6e/v7x."""
    for cand in (512, 256):
        if batch >= 2 * cand:
            return cand
    return 128


def _idec_kernel(alpha,
                 x_ref,
                 w_e1, b_e1, w_e2, b_e2, w_e3, b_e3, w_z, b_z,
                 w_d1, b_d1, w_d2, b_d2, w_d3, b_d3, w_xb, b_xb,
                 c_t_ref, c_sq_ref,
                 x_bar_ref, q_ref, z_ref):
    def dense(h, w_ref, b_ref, relu):
        # bf16 operands -> MXU, f32 accumulate + f32 bias add.
        y = jnp.dot(h, w_ref[...], preferred_element_type=jnp.float32) + b_ref[...]
        if relu:
            # ReLU on the bf16 value: packed vregs (half the VALU work / live vregs).
            return jnp.maximum(y.astype(jnp.bfloat16), jnp.bfloat16(0))
        return y

    # ---- AE encoder ----
    h = dense(x_ref[...], w_e1, b_e1, relu=True)
    h = dense(h, w_e2, b_e2, relu=True)
    h = dense(h, w_e3, b_e3, relu=True)
    z = dense(h, w_z, b_z, relu=False)          # f32; padded columns are exactly 0

    # ---- soft cluster assignment q (right after z: short f32 live range for z,
    # and the z writeback DMA overlaps the decoder matmuls) ----
    z_ref[...] = z.astype(z_ref.dtype)
    z_bf = z.astype(jnp.bfloat16)
    z_sq = jnp.sum(z * z, axis=1, keepdims=True)                          # (tb, 1)
    zc = jnp.dot(z_bf, c_t_ref[...], preferred_element_type=jnp.float32)  # (tb, Kp)
    # ||z - c||^2 = ||z||^2 + ||c||^2 - 2 z.c, clamped at 0 (cancellation guard).
    # Padded cluster columns carry ||c||^2 = 1e30 -> q underflows to ~0 there,
    # so no per-step column mask is needed.
    dist = jnp.maximum(z_sq + c_sq_ref[...] - 2.0 * zc, 0.0)
    denom = 1.0 + (dist if alpha == 1.0 else dist * (1.0 / alpha))
    q = pl.reciprocal(denom, approx=True)
    if alpha != 1.0:            # IDEC hard-codes alpha == 1.0, so the pow is skipped.
        q = q ** ((alpha + 1.0) / 2.0)
    # Exact row normalization (q feeds a KL target downstream); the divide is a
    # (tb, 1) column off the hot path.
    q = q * (1.0 / jnp.sum(q, axis=1, keepdims=True))
    q_ref[...] = q.astype(q_ref.dtype)

    # ---- AE decoder ----
    d = dense(z_bf, w_d1, b_d1, relu=True)
    d = dense(d, w_d2, b_d2, relu=True)
    d = dense(d, w_d3, b_d3, relu=True)
    x_bar = dense(d, w_xb, b_xb, relu=False)
    x_bar_ref[...] = x_bar.astype(x_bar_ref.dtype)


def prepare_idec_params(params, cluster_centers):
    """One-time prep (hoisted out of the per-call path): transpose PyTorch
    (out, in) Linear weights to (in, out); zero-pad output-feature dims to a
    multiple of 128 (the FIRST layer's input dim is left at the native width,
    since x is fed unpadded); cast weights to bf16 (biases stay f32);
    pre-transpose the cluster centers to (n_z, K) in bf16; precompute ||c||^2
    with padded columns set to a huge value (mask-free padding in the kernel)."""
    flat = []
    for li, (w, b) in enumerate(params):
        w = jnp.asarray(w, jnp.float32)
        out_f, in_f = w.shape
        in_p = in_f if li == 0 else _round_up(in_f)
        wt = _pad_to(w.T, (in_p, _round_up(out_f))).astype(jnp.bfloat16)
        bb = _pad_to(jnp.asarray(b, jnp.float32).reshape(1, -1), (1, _round_up(out_f)))
        flat += [wt, bb]
    c = jnp.asarray(cluster_centers, jnp.float32)        # (K, n_z)
    n_clusters, n_z = c.shape
    c_t = _pad_to(c.T, (_round_up(n_z), _round_up(n_clusters))).astype(jnp.bfloat16)
    c_sq = jnp.sum(c * c, axis=1).reshape(1, -1)
    c_sq = jnp.pad(c_sq, ((0, 0), (0, _round_up(n_clusters) - n_clusters)),
                   constant_values=1e30)
    return tuple(flat), c_t, c_sq


def _resident_spec(shape):
    # Full-array block with a constant index across the grid: the array stays
    # resident in VMEM.  (Weights + centers total ~0.5 MiB here, so no extra
    # buffering tricks are needed.)
    return pl.BlockSpec(shape, lambda i: (0, 0))


@functools.partial(jax.jit,
                   static_argnames=("n_input", "n_z", "n_clusters", "alpha", "tb"))
def idec_forward(x, flat, c_t, c_sq, *, n_input, n_z, n_clusters, alpha=1.0, tb=None):
    B = x.shape[0]
    if tb is None:
        tb = _pick_tb(B)
    Bp = _round_up(B, tb)
    n_in_p, nz_p, K_p = _round_up(n_input), _round_up(n_z), _round_up(n_clusters)

    # x keeps its native feature width (no contraction-dim padding); only the
    # batch dim is rounded up to the tile.
    # TODO(synk): in a real training loop, pre-cast/pre-pad x once outside the
    # step and consume padded outputs downstream to skip these per-call copies.
    x_b = x.astype(jnp.bfloat16)
    if Bp != B:
        x_b = jnp.pad(x_b, ((0, Bp - B), (0, 0)))

    in_specs = [pl.BlockSpec((tb, n_input), lambda i: (i, 0))]
    in_specs += [_resident_spec(a.shape) for a in flat]
    in_specs += [_resident_spec(c_t.shape), _resident_spec(c_sq.shape)]

    out_shape = (
        jax.ShapeDtypeStruct((Bp, n_in_p), jnp.bfloat16),  # x_bar (padded, bf16)
        jax.ShapeDtypeStruct((Bp, K_p), jnp.float32),      # q     (padded)
        jax.ShapeDtypeStruct((Bp, nz_p), jnp.float32),     # z     (padded)
    )
    out_specs = (
        pl.BlockSpec((tb, n_in_p), lambda i: (i, 0)),
        pl.BlockSpec((tb, K_p), lambda i: (i, 0)),
        pl.BlockSpec((tb, nz_p), lambda i: (i, 0)),
    )

    kernel = functools.partial(_idec_kernel, float(alpha))
    x_bar, q, z = pl.pallas_call(
        kernel,
        out_shape=out_shape,
        grid=(Bp // tb,),
        in_specs=in_specs,
        out_specs=out_specs,
        compiler_params=pltpu.CompilerParams(
            dimension_semantics=("parallel",)),    # grid steps split across v7x TCs
    )(x_b, *flat, c_t, c_sq)

    return x_bar[:B, :n_input], q[:B, :n_clusters], z[:B, :n_z]


def _reference(x, params, cluster_centers, alpha=1.0):
    """Pure-JAX reference of the PyTorch forward, emulating the kernel's
    bf16-operand / f32-accumulate matmuls so the comparison is tight."""
    def mm(h, w):  # w in PyTorch (out, in) layout
        return jnp.dot(h.astype(jnp.bfloat16), w.T.astype(jnp.bfloat16),
                       preferred_element_type=jnp.float32)
    h = x
    for i in range(3):
        w, b = params[i]
        h = jax.nn.relu(mm(h, w) + b)
    wz, bz = params[3]
    z = mm(h, wz) + bz
    d = z
    for i in range(4, 7):
        w, b = params[i]
        d = jax.nn.relu(mm(d, w) + b)
    wx, bx = params[7]
    x_bar = mm(d, wx) + bx
    diff = z[:, None, :] - cluster_centers[None, :, :]
    q = 1.0 / (1.0 + jnp.sum(diff * diff, axis=2) / alpha)
    q = q ** ((alpha + 1.0) / 2.0)
    q = q / jnp.sum(q, axis=1, keepdims=True)
    return x_bar, q, z


if __name__ == "__main__":
    # Small synthetic sizes consistent with the IDEC module signature.
    n_input, n_z, n_clusters = 64, 16, 8
    n_enc_1, n_enc_2, n_enc_3 = 32, 32, 64
    n_dec_1, n_dec_2, n_dec_3 = 64, 32, 32
    batch = 256     # -> tb=128, 2 "parallel" grid steps (one per v7x TensorCore)

    key = jax.random.PRNGKey(0)
    layer_dims = [
        (n_input, n_enc_1), (n_enc_1, n_enc_2), (n_enc_2, n_enc_3),
        (n_enc_3, n_z),
        (n_z, n_dec_1), (n_dec_1, n_dec_2), (n_dec_2, n_dec_3),
        (n_dec_3, n_input),
    ]
    keys = jax.random.split(key, 2 * len(layer_dims) + 2)
    params = []
    for li, (fin, fout) in enumerate(layer_dims):
        w = jax.random.normal(keys[2 * li], (fout, fin), jnp.float32) * 0.1
        b = jax.random.normal(keys[2 * li + 1], (fout,), jnp.float32) * 0.01
        params.append((w, b))
    cluster_centers = jax.random.normal(keys[-2], (n_clusters, n_z), jnp.float32)
    x = jax.random.normal(keys[-1], (batch, n_input), jnp.float32)

    # One-time parameter prep (transpose + pad + bf16), reused across calls.
    flat, c_t, c_sq = prepare_idec_params(params, cluster_centers)

    x_bar, q, z = idec_forward(x, flat, c_t, c_sq,
                               n_input=n_input, n_z=n_z, n_clusters=n_clusters,
                               alpha=1.0)
    jax.block_until_ready((x_bar, q, z))

    # Correctness check against a pure-JAX reference of the PyTorch forward.
    xb_ref, q_ref, z_ref = _reference(x, params, cluster_centers, alpha=1.0)
    assert jnp.allclose(x_bar.astype(jnp.float32), xb_ref, atol=1e-2, rtol=1e-2)
    assert jnp.allclose(z, z_ref, atol=1e-2, rtol=1e-2)
    assert jnp.allclose(q, q_ref, atol=1e-2, rtol=1e-2)
    assert jnp.allclose(jnp.sum(q, axis=1), 1.0, atol=1e-2)

    print("KERNEL_OK")
</pallas_src>

<mosaic_0001>
module attributes {stable_mosaic.version = 11 : i64} {
  func.func @_idec_kernel(%arg0: i32, %arg1: memref<128x64xbf16, #tpu.memory_space<vmem>>, %arg2: memref<64x128xbf16, #tpu.memory_space<vmem>>, %arg3: memref<1x128xf32, #tpu.memory_space<vmem>>, %arg4: memref<128x128xbf16, #tpu.memory_space<vmem>>, %arg5: memref<1x128xf32, #tpu.memory_space<vmem>>, %arg6: memref<128x128xbf16, #tpu.memory_space<vmem>>, %arg7: memref<1x128xf32, #tpu.memory_space<vmem>>, %arg8: memref<128x128xbf16, #tpu.memory_space<vmem>>, %arg9: memref<1x128xf32, #tpu.memory_space<vmem>>, %arg10: memref<128x128xbf16, #tpu.memory_space<vmem>>, %arg11: memref<1x128xf32, #tpu.memory_space<vmem>>, %arg12: memref<128x128xbf16, #tpu.memory_space<vmem>>, %arg13: memref<1x128xf32, #tpu.memory_space<vmem>>, %arg14: memref<128x128xbf16, #tpu.memory_space<vmem>>, %arg15: memref<1x128xf32, #tpu.memory_space<vmem>>, %arg16: memref<128x128xbf16, #tpu.memory_space<vmem>>, %arg17: memref<1x128xf32, #tpu.memory_space<vmem>>, %arg18: memref<128x128xbf16, #tpu.memory_space<vmem>>, %arg19: memref<1x128xf32, #tpu.memory_space<vmem>>, %arg20: memref<128x128xbf16, #tpu.memory_space<vmem>>, %arg21: memref<128x128xf32, #tpu.memory_space<vmem>>, %arg22: memref<128x128xf32, #tpu.memory_space<vmem>>) attributes {dimension_semantics = [#tpu.dimension_semantics<parallel>], iteration_bounds = array<i64: 2>, scalar_prefetch = 0 : i64, scratch_operands = 0 : i64, tpu.core_type = #tpu.core_type<tc>, window_params = [{transform_indices = @transform_0, window_bounds = array<i64: 128, 64>}, {pipeline_mode = #tpu.pipeline_mode<synchronous>, transform_indices = @transform_1, window_bounds = array<i64: 64, 128>}, {pipeline_mode = #tpu.pipeline_mode<synchronous>, transform_indices = @transform_2, window_bounds = array<i64: 1, 128>}, {pipeline_mode = #tpu.pipeline_mode<synchronous>, transform_indices = @transform_3, window_bounds = array<i64: 128, 128>}, {pipeline_mode = #tpu.pipeline_mode<synchronous>, transform_indices = @transform_4, window_bounds = array<i64: 1, 128>}, {pipeline_mode = #tpu.pipeline_mode<synchronous>, transform_indices = @transform_5, window_bounds = array<i64: 128, 128>}, {pipeline_mode = #tpu.pipeline_mode<synchronous>, transform_indices = @transform_6, window_bounds = array<i64: 1, 128>}, {pipeline_mode = #tpu.pipeline_mode<synchronous>, transform_indices = @transform_7, window_bounds = array<i64: 128, 128>}, {pipeline_mode = #tpu.pipeline_mode<synchronous>, transform_indices = @transform_8, window_bounds = array<i64: 1, 128>}, {pipeline_mode = #tpu.pipeline_mode<synchronous>, transform_indices = @transform_9, window_bounds = array<i64: 128, 128>}, {pipeline_mode = #tpu.pipeline_mode<synchronous>, transform_indices = @transform_10, window_bounds = array<i64: 1, 128>}, {pipeline_mode = #tpu.pipeline_mode<synchronous>, transform_indices = @transform_11, window_bounds = array<i64: 128, 128>}, {pipeline_mode = #tpu.pipeline_mode<synchronous>, transform_indices = @transform_12, window_bounds = array<i64: 1, 128>}, {pipeline_mode = #tpu.pipeline_mode<synchronous>, transform_indices = @transform_13, window_bounds = array<i64: 128, 128>}, {pipeline_mode = #tpu.pipeline_mode<synchronous>, transform_indices = @transform_14, window_bounds = array<i64: 1, 128>}, {pipeline_mode = #tpu.pipeline_mode<synchronous>, transform_indices = @transform_15, window_bounds = array<i64: 128, 128>}, {pipeline_mode = #tpu.pipeline_mode<synchronous>, transform_indices = @transform_16, window_bounds = array<i64: 1, 128>}, {pipeline_mode = #tpu.pipeline_mode<synchronous>, transform_indices = @transform_17, window_bounds = array<i64: 128, 128>}, {pipeline_mode = #tpu.pipeline_mode<synchronous>, transform_indices = @transform_18, window_bounds = array<i64: 1, 128>}, {transform_indices = @transform_19, window_bounds = array<i64: 128, 128>}, {transform_indices = @transform_20, window_bounds = array<i64: 128, 128>}, {transform_indices = @transform_21, window_bounds = array<i64: 128, 128>}]} {
    %c0 = arith.constant 0 : index
    %c0_0 = arith.constant 0 : index
    %0 = vector.load %arg1[%c0, %c0_0] : memref<128x64xbf16, #tpu.memory_space<vmem>>, vector<128x64xbf16>
    %c0_1 = arith.constant 0 : index
    %c0_2 = arith.constant 0 : index
    %1 = vector.load %arg2[%c0_1, %c0_2] : memref<64x128xbf16, #tpu.memory_space<vmem>>, vector<64x128xbf16>
    %cst = arith.constant dense<0.000000e+00> : vector<128x128xf32>
    %2 = tpu.matmul %0, %1, %cst {dimension_numbers = #tpu.dot_dimension_numbers<[1], [0], [0], [1], [0, 0, 1, 1], [], []>} : vector<128x64xbf16>, vector<64x128xbf16>, vector<128x128xf32> -> vector<128x128xf32>
    %c0_3 = arith.constant 0 : index
    %c0_4 = arith.constant 0 : index
    %3 = vector.load %arg3[%c0_3, %c0_4] : memref<1x128xf32, #tpu.memory_space<vmem>>, vector<1x128xf32>
    %4 = vector.broadcast %3 : vector<1x128xf32> to vector<128x128xf32>
    %5 = arith.addf %2, %4 : vector<128x128xf32>
    %6 = arith.truncf %5 : vector<128x128xf32> to vector<128x128xbf16>
    %cst_5 = arith.constant 0.000000e+00 : bf16
    %7 = vector.broadcast %cst_5 : bf16 to vector<128x128xbf16>
    %8 = arith.maximumf %6, %7 : vector<128x128xbf16>
    %c0_6 = arith.constant 0 : index
    %c0_7 = arith.constant 0 : index
    %9 = vector.load %arg4[%c0_6, %c0_7] : memref<128x128xbf16, #tpu.memory_space<vmem>>, vector<128x128xbf16>
    %cst_8 = arith.constant dense<0.000000e+00> : vector<128x128xf32>
    %10 = tpu.matmul %8, %9, %cst_8 {dimension_numbers = #tpu.dot_dimension_numbers<[1], [0], [0], [1], [0, 0, 1, 1], [], []>} : vector<128x128xbf16>, vector<128x128xbf16>, vector<128x128xf32> -> vector<128x128xf32>
    %c0_9 = arith.constant 0 : index
    %c0_10 = arith.constant 0 : index
    %11 = vector.load %arg5[%c0_9, %c0_10] : memref<1x128xf32, #tpu.memory_space<vmem>>, vector<1x128xf32>
    %12 = vector.broadcast %11 : vector<1x128xf32> to vector<128x128xf32>
    %13 = arith.addf %10, %12 : vector<128x128xf32>
    %14 = arith.truncf %13 : vector<128x128xf32> to vector<128x128xbf16>
    %cst_11 = arith.constant 0.000000e+00 : bf16
    %15 = vector.broadcast %cst_11 : bf16 to vector<128x128xbf16>
    %16 = arith.maximumf %14, %15 : vector<128x128xbf16>
    %c0_12 = arith.constant 0 : index
    %c0_13 = arith.constant 0 : index
    %17 = vector.load %arg6[%c0_12, %c0_13] : memref<128x128xbf16, #tpu.memory_space<vmem>>, vector<128x128xbf16>
    %cst_14 = arith.constant dense<0.000000e+00> : vector<128x128xf32>
    %18 = tpu.matmul %16, %17, %cst_14 {dimension_numbers = #tpu.dot_dimension_numbers<[1], [0], [0], [1], [0, 0, 1, 1], [], []>} : vector<128x128xbf16>, vector<128x128xbf16>, vector<128x128xf32> -> vector<128x128xf32>
    %c0_15 = arith.constant 0 : index
    %c0_16 = arith.constant 0 : index
    %19 = vector.load %arg7[%c0_15, %c0_16] : memref<1x128xf32, #tpu.memory_space<vmem>>, vector<1x128xf32>
    %20 = vector.broadcast %19 : vector<1x128xf32> to vector<128x128xf32>
    %21 = arith.addf %18, %20 : vector<128x128xf32>
    %22 = arith.truncf %21 : vector<128x128xf32> to vector<128x128xbf16>
    %cst_17 = arith.constant 0.000000e+00 : bf16
    %23 = vector.broadcast %cst_17 : bf16 to vector<128x128xbf16>
    %24 = arith.maximumf %22, %23 : vector<128x128xbf16>
    %c0_18 = arith.constant 0 : index
    %c0_19 = arith.constant 0 : index
    %25 = vector.load %arg8[%c0_18, %c0_19] : memref<128x128xbf16, #tpu.memory_space<vmem>>, vector<128x128xbf16>
    %cst_20 = arith.constant dense<0.000000e+00> : vector<128x128xf32>
    %26 = tpu.matmul %24, %25, %cst_20 {dimension_numbers = #tpu.dot_dimension_numbers<[1], [0], [0], [1], [0, 0, 1, 1], [], []>} : vector<128x128xbf16>, vector<128x128xbf16>, vector<128x128xf32> -> vector<128x128xf32>
    %c0_21 = arith.constant 0 : index
    %c0_22 = arith.constant 0 : index
    %27 = vector.load %arg9[%c0_21, %c0_22] : memref<1x128xf32, #tpu.memory_space<vmem>>, vector<1x128xf32>
    %28 = vector.broadcast %27 : vector<1x128xf32> to vector<128x128xf32>
    %29 = arith.addf %26, %28 : vector<128x128xf32>
    %c0_23 = arith.constant 0 : index
    %c0_24 = arith.constant 0 : index
    %30 = vector.load %arg22[%c0_23, %c0_24] : memref<128x128xf32, #tpu.memory_space<vmem>>, vector<128x128xf32>
    tpu.vector_store %arg22[%c0_23, %c0_24], %29 {strides = array<i32>} : memref<128x128xf32, #tpu.memory_space<vmem>>, vector<128x128xf32>,
    %31 = arith.truncf %29 : vector<128x128xf32> to vector<128x128xbf16>
    %32 = arith.mulf %29, %29 : vector<128x128xf32>
    %cst_25 = arith.constant dense<0.000000e+00> : vector<128xf32>
    %33 = vector.multi_reduction <add>, %32, %cst_25 [1] : vector<128x128xf32> to vector<128xf32>
    %34 = vector.shape_cast %33 : vector<128xf32> to vector<128x1xf32>
    %c0_26 = arith.constant 0 : index
    %c0_27 = arith.constant 0 : index
    %35 = vector.load %arg18[%c0_26, %c0_27] : memref<128x128xbf16, #tpu.memory_space<vmem>>, vector<128x128xbf16>
    %cst_28 = arith.constant dense<0.000000e+00> : vector<128x128xf32>
    %36 = tpu.matmul %31, %35, %cst_28 {dimension_numbers = #tpu.dot_dimension_numbers<[1], [0], [0], [1], [0, 0, 1, 1], [], []>} : vector<128x128xbf16>, vector<128x128xbf16>, vector<128x128xf32> -> vector<128x128xf32>
    %c0_29 = arith.constant 0 : index
    %c0_30 = arith.constant 0 : index
    %37 = vector.load %arg19[%c0_29, %c0_30] : memref<1x128xf32, #tpu.memory_space<vmem>>, vector<1x128xf32>
    %38 = vector.broadcast %34 : vector<128x1xf32> to vector<128x128xf32>
    %39 = vector.broadcast %37 : vector<1x128xf32> to vector<128x128xf32>
    %40 = arith.addf %38, %39 : vector<128x128xf32>
    %cst_31 = arith.constant 2.000000e+00 : f32
    %41 = vector.broadcast %cst_31 : f32 to vector<128x128xf32>
    %42 = arith.mulf %41, %36 : vector<128x128xf32>
    %43 = arith.subf %40, %42 : vector<128x128xf32>
    %cst_32 = arith.constant 0.000000e+00 : f32
    %44 = vector.broadcast %cst_32 : f32 to vector<128x128xf32>
    %45 = arith.maximumf %43, %44 : vector<128x128xf32>
    %cst_33 = arith.constant 1.000000e+00 : f32
    %46 = vector.broadcast %cst_33 : f32 to vector<128x128xf32>
    %47 = arith.addf %46, %45 : vector<128x128xf32>
    %48 = tpu.reciprocal %47 {approx = true} : vector<128x128xf32> -> vector<128x128xf32>
    %cst_34 = arith.constant dense<0.000000e+00> : vector<128xf32>
    %49 = vector.multi_reduction <add>, %48, %cst_34 [1] : vector<128x128xf32> to vector<128xf32>
    %50 = vector.shape_cast %49 : vector<128xf32> to vector<128x1xf32>
    %cst_35 = arith.constant 1.000000e+00 : f32
    %51 = vector.broadcast %cst_35 : f32 to vector<128x1xf32>
    %52 = arith.divf %51, %50 : vector<128x1xf32>
    %53 = vector.broadcast %52 : vector<128x1xf32> to vector<128x128xf32>
    %54 = arith.mulf %48, %53 : vector<128x128xf32>
    %c0_36 = arith.constant 0 : index
    %c0_37 = arith.constant 0 : index
    %55 = vector.load %arg21[%c0_36, %c0_37] : memref<128x128xf32, #tpu.memory_space<vmem>>, vector<128x128xf32>
    tpu.vector_store %arg21[%c0_36, %c0_37], %54 {strides = array<i32>} : memref<128x128xf32, #tpu.memory_space<vmem>>, vector<128x128xf32>,
    %c0_38 = arith.constant 0 : index
    %c0_39 = arith.constant 0 : index
    %56 = vector.load %arg10[%c0_38, %c0_39] : memref<128x128xbf16, #tpu.memory_space<vmem>>, vector<128x128xbf16>
    %cst_40 = arith.constant dense<0.000000e+00> : vector<128x128xf32>
    %57 = tpu.matmul %31, %56, %cst_40 {dimension_numbers = #tpu.dot_dimension_numbers<[1], [0], [0], [1], [0, 0, 1, 1], [], []>} : vector<128x128xbf16>, vector<128x128xbf16>, vector<128x128xf32> -> vector<128x128xf32>
    %c0_41 = arith.constant 0 : index
    %c0_42 = arith.constant 0 : index
    %58 = vector.load %arg11[%c0_41, %c0_42] : memref<1x128xf32, #tpu.memory_space<vmem>>, vector<1x128xf32>
    %59 = vector.broadcast %58 : vector<1x128xf32> to vector<128x128xf32>
    %60 = arith.addf %57, %59 : vector<128x128xf32>
    %61 = arith.truncf %60 : vector<128x128xf32> to vector<128x128xbf16>
    %cst_43 = arith.constant 0.000000e+00 : bf16
    %62 = vector.broadcast %cst_43 : bf16 to vector<128x128xbf16>
    %63 = arith.maximumf %61, %62 : vector<128x128xbf16>
    %c0_44 = arith.constant 0 : index
    %c0_45 = arith.constant 0 : index
    %64 = vector.load %arg12[%c0_44, %c0_45] : memref<128x128xbf16, #tpu.memory_space<vmem>>, vector<128x128xbf16>
    %cst_46 = arith.constant dense<0.000000e+00> : vector<128x128xf32>
    %65 = tpu.matmul %63, %64, %cst_46 {dimension_numbers = #tpu.dot_dimension_numbers<[1], [0], [0], [1], [0, 0, 1, 1], [], []>} : vector<128x128xbf16>, vector<128x128xbf16>, vector<128x128xf32> -> vector<128x128xf32>
    %c0_47 = arith.constant 0 : index
    %c0_48 = arith.constant 0 : index
    %66 = vector.load %arg13[%c0_47, %c0_48] : memref<1x128xf32, #tpu.memory_space<vmem>>, vector<1x128xf32>
    %67 = vector.broadcast %66 : vector<1x128xf32> to vector<128x128xf32>
    %68 = arith.addf %65, %67 : vector<128x128xf32>
    %69 = arith.truncf %68 : vector<128x128xf32> to vector<128x128xbf16>
    %cst_49 = arith.constant 0.000000e+00 : bf16
    %70 = vector.broadcast %cst_49 : bf16 to vector<128x128xbf16>
    %71 = arith.maximumf %69, %70 : vector<128x128xbf16>
    %c0_50 = arith.constant 0 : index
    %c0_51 = arith.constant 0 : index
    %72 = vector.load %arg14[%c0_50, %c0_51] : memref<128x128xbf16, #tpu.memory_space<vmem>>, vector<128x128xbf16>
    %cst_52 = arith.constant dense<0.000000e+00> : vector<128x128xf32>
    %73 = tpu.matmul %71, %72, %cst_52 {dimension_numbers = #tpu.dot_dimension_numbers<[1], [0], [0], [1], [0, 0, 1, 1], [], []>} : vector<128x128xbf16>, vector<128x128xbf16>, vector<128x128xf32> -> vector<128x128xf32>
    %c0_53 = arith.constant 0 : index
    %c0_54 = arith.constant 0 : index
    %74 = vector.load %arg15[%c0_53, %c0_54] : memref<1x128xf32, #tpu.memory_space<vmem>>, vector<1x128xf32>
    %75 = vector.broadcast %74 : vector<1x128xf32> to vector<128x128xf32>
    %76 = arith.addf %73, %75 : vector<128x128xf32>
    %77 = arith.truncf %76 : vector<128x128xf32> to vector<128x128xbf16>
    %cst_55 = arith.constant 0.000000e+00 : bf16
    %78 = vector.broadcast %cst_55 : bf16 to vector<128x128xbf16>
    %79 = arith.maximumf %77, %78 : vector<128x128xbf16>
    %c0_56 = arith.constant 0 : index
    %c0_57 = arith.constant 0 : index
    %80 = vector.load %arg16[%c0_56, %c0_57] : memref<128x128xbf16, #tpu.memory_space<vmem>>, vector<128x128xbf16>
    %cst_58 = arith.constant dense<0.000000e+00> : vector<128x128xf32>
    %81 = tpu.matmul %79, %80, %cst_58 {dimension_numbers = #tpu.dot_dimension_numbers<[1], [0], [0], [1], [0, 0, 1, 1], [], []>} : vector<128x128xbf16>, vector<128x128xbf16>, vector<128x128xf32> -> vector<128x128xf32>
    %c0_59 = arith.constant 0 : index
    %c0_60 = arith.constant 0 : index
    %82 = vector.load %arg17[%c0_59, %c0_60] : memref<1x128xf32, #tpu.memory_space<vmem>>, vector<1x128xf32>
    %83 = vector.broadcast %82 : vector<1x128xf32> to vector<128x128xf32>
    %84 = arith.addf %81, %83 : vector<128x128xf32>
    %85 = arith.truncf %84 : vector<128x128xf32> to vector<128x128xbf16>
    %c0_61 = arith.constant 0 : index
    %c0_62 = arith.constant 0 : index
    %86 = vector.load %arg20[%c0_61, %c0_62] : memref<128x128xbf16, #tpu.memory_space<vmem>>, vector<128x128xbf16>
    tpu.vector_store %arg20[%c0_61, %c0_62], %85 {strides = array<i32>} : memref<128x128xbf16, #tpu.memory_space<vmem>>, vector<128x128xbf16>,
    return
  }
  func.func @transform_0(%arg0: i32) -> (i32, i32) {
    %c0_i32 = arith.constant 0 : i32
    %c0_i32_0 = arith.constant 0 : i32
    return %arg0, %c0_i32 : i32, i32
  }
  func.func @transform_1(%arg0: i32) -> (i32, i32) {
    %c0_i32 = arith.constant 0 : i32
    %c0_i32_0 = arith.constant 0 : i32
    %c0_i32_1 = arith.constant 0 : i32
    return %c0_i32, %c0_i32_0 : i32, i32
  }
  func.func @transform_2(%arg0: i32) -> (i32, i32) {
    %c0_i32 = arith.constant 0 : i32
    %c0_i32_0 = arith.constant 0 : i32
    %c0_i32_1 = arith.constant 0 : i32
    return %c0_i32, %c0_i32_0 : i32, i32
  }
  func.func @transform_3(%arg0: i32) -> (i32, i32) {
    %c0_i32 = arith.constant 0 : i32
    %c0_i32_0 = arith.constant 0 : i32
    %c0_i32_1 = arith.constant 0 : i32
    return %c0_i32, %c0_i32_0 : i32, i32
  }
  func.func @transform_4(%arg0: i32) -> (i32, i32) {
    %c0_i32 = arith.constant 0 : i32
    %c0_i32_0 = arith.constant 0 : i32
    %c0_i32_1 = arith.constant 0 : i32
    return %c0_i32, %c0_i32_0 : i32, i32
  }
  func.func @transform_5(%arg0: i32) -> (i32, i32) {
    %c0_i32 = arith.constant 0 : i32
    %c0_i32_0 = arith.constant 0 : i32
    %c0_i32_1 = arith.constant 0 : i32
    return %c0_i32, %c0_i32_0 : i32, i32
  }
  func.func @transform_6(%arg0: i32) -> (i32, i32) {
    %c0_i32 = arith.constant 0 : i32
    %c0_i32_0 = arith.constant 0 : i32
    %c0_i32_1 = arith.constant 0 : i32
    return %c0_i32, %c0_i32_0 : i32, i32
  }
  func.func @transform_7(%arg0: i32) -> (i32, i32) {
    %c0_i32 = arith.constant 0 : i32
    %c0_i32_0 = arith.constant 0 : i32
    %c0_i32_1 = arith.constant 0 : i32
    return %c0_i32, %c0_i32_0 : i32, i32
  }
  func.func @transform_8(%arg0: i32) -> (i32, i32) {
    %c0_i32 = arith.constant 0 : i32
    %c0_i32_0 = arith.constant 0 : i32
    %c0_i32_1 = arith.constant 0 : i32
    return %c0_i32, %c0_i32_0 : i32, i32
  }
  func.func @transform_9(%arg0: i32) -> (i32, i32) {
    %c0_i32 = arith.constant 0 : i32
    %c0_i32_0 = arith.constant 0 : i32
    %c0_i32_1 = arith.constant 0 : i32
    return %c0_i32, %c0_i32_0 : i32, i32
  }
  func.func @transform_10(%arg0: i32) -> (i32, i32) {
    %c0_i32 = arith.constant 0 : i32
    %c0_i32_0 = arith.constant 0 : i32
    %c0_i32_1 = arith.constant 0 : i32
    return %c0_i32, %c0_i32_0 : i32, i32
  }
  func.func @transform_11(%arg0: i32) -> (i32, i32) {
    %c0_i32 = arith.constant 0 : i32
    %c0_i32_0 = arith.constant 0 : i32
    %c0_i32_1 = arith.constant 0 : i32
    return %c0_i32, %c0_i32_0 : i32, i32
  }
  func.func @transform_12(%arg0: i32) -> (i32, i32) {
    %c0_i32 = arith.constant 0 : i32
    %c0_i32_0 = arith.constant 0 : i32
    %c0_i32_1 = arith.constant 0 : i32
    return %c0_i32, %c0_i32_0 : i32, i32
  }
  func.func @transform_13(%arg0: i32) -> (i32, i32) {
    %c0_i32 = arith.constant 0 : i32
    %c0_i32_0 = arith.constant 0 : i32
    %c0_i32_1 = arith.constant 0 : i32
    return %c0_i32, %c0_i32_0 : i32, i32
  }
  func.func @transform_14(%arg0: i32) -> (i32, i32) {
    %c0_i32 = arith.constant 0 : i32
    %c0_i32_0 = arith.constant 0 : i32
    %c0_i32_1 = arith.constant 0 : i32
    return %c0_i32, %c0_i32_0 : i32, i32
  }
  func.func @transform_15(%arg0: i32) -> (i32, i32) {
    %c0_i32 = arith.constant 0 : i32
    %c0_i32_0 = arith.constant 0 : i32
    %c0_i32_1 = arith.constant 0 : i32
    return %c0_i32, %c0_i32_0 : i32, i32
  }
  func.func @transform_16(%arg0: i32) -> (i32, i32) {
    %c0_i32 = arith.constant 0 : i32
    %c0_i32_0 = arith.constant 0 : i32
    %c0_i32_1 = arith.constant 0 : i32
    return %c0_i32, %c0_i32_0 : i32, i32
  }
  func.func @transform_17(%arg0: i32) -> (i32, i32) {
    %c0_i32 = arith.constant 0 : i32
    %c0_i32_0 = arith.constant 0 : i32
    %c0_i32_1 = arith.constant 0 : i32
    return %c0_i32, %c0_i32_0 : i32, i32
  }
  func.func @transform_18(%arg0: i32) -> (i32, i32) {
    %c0_i32 = arith.constant 0 : i32
    %c0_i32_0 = arith.constant 0 : i32
    %c0_i32_1 = arith.constant 0 : i32
    return %c0_i32, %c0_i32_0 : i32, i32
  }
  func.func @transform_19(%arg0: i32) -> (i32, i32) {
    %c0_i32 = arith.constant 0 : i32
    %c0_i32_0 = arith.constant 0 : i32
    return %arg0, %c0_i32 : i32, i32
  }
  func.func @transform_20(%arg0: i32) -> (i32, i32) {
    %c0_i32 = arith.constant 0 : i32
    %c0_i32_0 = arith.constant 0 : i32
    return %arg0, %c0_i32 : i32, i32
  }
  func.func @transform_21(%arg0: i32) -> (i32, i32) {
    %c0_i32 = arith.constant 0 : i32
    %c0_i32_0 = arith.constant 0 : i32
    return %arg0, %c0_i32 : i32, i32
  }
}

</mosaic_0001>

<llo_original>
// kernel: idec_forward.1
$region0: #{idec_forward.1}
  #allocation0 [shape = 'u32[]', space=smem, size = 0x4, offset = 0x4, fixed_abs, tag = 'smem constant byte address 0x4 - core index']
  #allocation1 [shape = 'u32[144,128]{1,0:T(1,128)}', space=vmem, size = 0x12000, scoped, tag = 'internal scratch']
  %s0 = inlined_call_operand.vmem [shape: bf16[256,64], index: 0, kind: input, shape index: {}]
  %s1 = inlined_call_operand.hbm [shape: bf16[64,128], index: 1, kind: input, shape index: {}]
  %s2 = inlined_call_operand.hbm [shape: f32[1,128], index: 2, kind: input, shape index: {}]
  %s3 = inlined_call_operand.vmem [shape: bf16[128,128], index: 3, kind: input, shape index: {}]
  %s4 = inlined_call_operand.vmem [shape: f32[1,128], index: 4, kind: input, shape index: {}]
  %s5 = inlined_call_operand.vmem [shape: bf16[128,128], index: 5, kind: input, shape index: {}]
  %s6 = inlined_call_operand.vmem [shape: f32[1,128], index: 6, kind: input, shape index: {}]
  %s7 = inlined_call_operand.vmem [shape: bf16[128,128], index: 7, kind: input, shape index: {}]
  %s8 = inlined_call_operand.vmem [shape: f32[1,128], index: 8, kind: input, shape index: {}]
  %s9 = inlined_call_operand.vmem [shape: bf16[128,128], index: 9, kind: input, shape index: {}]
  %s10 = inlined_call_operand.vmem [shape: f32[1,128], index: 10, kind: input, shape index: {}]
  %s11 = inlined_call_operand.vmem [shape: bf16[128,128], index: 11, kind: input, shape index: {}]
  %s12 = inlined_call_operand.vmem [shape: f32[1,128], index: 12, kind: input, shape index: {}]
  %s13 = inlined_call_operand.vmem [shape: bf16[128,128], index: 13, kind: input, shape index: {}]
  %s14 = inlined_call_operand.vmem [shape: f32[1,128], index: 14, kind: input, shape index: {}]
  %s15 = inlined_call_operand.hbm [shape: bf16[128,128], index: 15, kind: input, shape index: {}]
  %s16 = inlined_call_operand.vmem [shape: f32[1,128], index: 16, kind: input, shape index: {}]
  %s17 = inlined_call_operand.hbm [shape: bf16[128,128], index: 17, kind: input, shape index: {}]
  %s18 = inlined_call_operand.vmem [shape: f32[1,128], index: 18, kind: input, shape index: {}]
  %s19 = inlined_call_operand.vmem [shape: bf16[256,128], index: 19, kind: output, shape index: {0}]
  %s20 = inlined_call_operand.vmem [shape: f32[256,128], index: 20, kind: output, shape index: {1}]
  %s21 = inlined_call_operand.vmem [shape: f32[256,128], index: 21, kind: output, shape index: {2}]
  %22 = xla_tuple %s19, %s20, %s21
  %s23 = sld [smem:[#allocation0]]
  $region141: #{idec_forward.1} parent=0
    _
  %s25 = ssub.s32 1, %s23
  %s26 = scalar_select 0, %s25, %s23
  $region1: #{idec_forward.1} parent=0
    #allocation2 [shape = 'u8[16384]{0}', space=vmem, size = 0x4000, scoped, tag = 'input window, operand 1, single buffered']
    #allocation3 [shape = 's32[2]{0}', space=sflag, size = 0x8, scoped, tag = 'scoped memory for idec_forward.1']
    #allocation4 [shape = 'u8[512]{0}', space=vmem, size = 0x400, scoped, tag = 'input window, operand 2, single buffered']
    #allocation5 [shape = 's32[1]{0}', space=sflag, size = 0x4, scoped, tag = 'scoped memory for idec_forward.1']
    #allocation6 [shape = 'u8[32768]{0}', space=vmem, size = 0x8000, scoped, tag = 'input window, operand 15, single buffered']
    #allocation7 [shape = 'u8[32768]{0}', space=vmem, size = 0x8000, scoped, tag = 'input window, operand 17, single buffered']
    #allocation8 [shape = 's32[1]{0}', space=sflag, size = 0x4, scoped, tag = 'scoped memory for idec_forward.1']
    %27 = vsyncpa [#allocation3], 0
    %28 = vsyncpa [#allocation5], 0
    %29 = vsyncpa [#allocation8], 0
    loop: start=0, step=1, limit=4
    $region2: #{idec_forward.1} parent=1 // loop_pre_header
      _
    $region3: #{idec_forward.1} parent=1 // loop_header
      %s31 = sphi 0, %s35
      %p32 = scmp.ge.s32.totalorder %s31, 4
      %s41 = sphi 0, %s43
      %s44 = sphi 0, %s41
      %s45 = sphi 0, %s44
      %s61 = sphi 0, %s45
      %s65 = sphi 0, %s65
      %s67 = sphi 0, %s65
      %s68 = sphi 0, %s67
      %s82 = sphi 0, %s68
      %s86 = sphi 0, %s86
      %s88 = sphi 0, %s86
      %s89 = sphi 0, %s88
      %s103 = sphi 0, %s89
      %s107 = sphi 0, %s107
      %s109 = sphi 0, %s107
      %s110 = sphi 0, %s109
      %s124 = sphi 0, %s110
      %s128 = sphi 0, %s128
      %s130 = sphi 0, %s128
      %s131 = sphi 0, %s130
      %s145 = sphi 0, %s131
      %s149 = sphi 0, %s149
      %s151 = sphi 0, %s149
      %s152 = sphi 0, %s151
      %s166 = sphi 0, %s152
      %s170 = sphi 0, %s170
      %s172 = sphi 0, %s170
      %s173 = sphi 0, %s172
      %s187 = sphi 0, %s173
      %s191 = sphi 0, %s191
      %s193 = sphi 0, %s191
      %s194 = sphi 0, %s193
      %s208 = sphi 0, %s194
      %s212 = sphi 0, %s212
      %s214 = sphi 0, %s212
      %s215 = sphi 0, %s214
      %s229 = sphi 0, %s215
      %s233 = sphi 0, %s233
      %s235 = sphi 0, %s233
      %s236 = sphi 0, %s235
      %s250 = sphi 0, %s236
      %s254 = sphi 0, %s254
      %s256 = sphi 0, %s254
      %s257 = sphi 0, %s256
      %s271 = sphi 0, %s257
      %s275 = sphi 0, %s275
      %s277 = sphi 0, %s275
      %s278 = sphi 0, %s277
      %s292 = sphi 0, %s278
      %s296 = sphi 0, %s296
      %s298 = sphi 0, %s296
      %s299 = sphi 0, %s298
      %s313 = sphi 0, %s299
      %s317 = sphi 0, %s317
      %s319 = sphi 0, %s317
      %s320 = sphi 0, %s319
      %s334 = sphi 0, %s320
      %s338 = sphi 0, %s338
      %s340 = sphi 0, %s338
      %s341 = sphi 0, %s340
      %s355 = sphi 0, %s341
      %s359 = sphi 0, %s359
      %s361 = sphi 0, %s359
      %s362 = sphi 0, %s361
      %s376 = sphi 0, %s362
      %s380 = sphi 0, %s380
      %s382 = sphi 0, %s380
      %s383 = sphi 0, %s382
      %s397 = sphi 0, %s383
      %s401 = sphi 0, %s401
      %s403 = sphi 0, %s401
      %s404 = sphi 0, %s403
      %s418 = sphi 0, %s404
      %s422 = sphi 0, %s422
      %s424 = sphi 0, %s422
      %s425 = sphi 0, %s424
      %s439 = sphi 0, %s425
      %s445 = sphi 0, %s447
      %s448 = sphi 0, %s445
      %s449 = sphi 0, %s448
      %s465 = sphi 0, %s449
      %s471 = sphi 0, %s473
      %s474 = sphi 0, %s471
      %s475 = sphi 0, %s474
      %s491 = sphi 0, %s475
      %s497 = sphi 0, %s499
      %s500 = sphi 0, %s497
      %s501 = sphi 0, %s500
      %s517 = sphi 0, %s501
    $region4: #{idec_forward.1} parent=1 // loop_header_branch
      %34 = sbr.rel (%p32) target = $region8
    $region5: #{idec_forward.1} parent=1 // loop_body
      %s36 = ssub.s32 %s31, 1
      %s37 = ssub.s32 %s31, 2
      %s38 = sadd.s32 %s31, 1
      %s39 = ssub.s32 %s31, %s38
      %p40 = scmp.eq.s32.totalorder %s39, 0
      %s42 = sadd.s32 %s41, 1
      %s43 = scalar_select %p40, %s41, %s42
      %p46 = pneg %p40
      %p47 = scmp.eq.s32.totalorder %s31, 1
      %p48 = por %p46, %p47
      %p49 = scmp.ne.s32.totalorder %s41, %s44
      %p50 = scmp.eq.s32.totalorder %s31, 0
      %p51 = por %p49, %p50
      %p52 = scmp.ne.s32.totalorder %s41, %s44
      %p53 = scmp.eq.s32.totalorder %s36, 1
      %p54 = por %p52, %p53
      %p55 = scmp.ne.s32.totalorder %s44, %s45
      %p56 = scmp.eq.s32.totalorder %s36, 0
      %p57 = por %p55, %p56
      %p58 = scmp.ne.s32.totalorder %s44, %s45
      %p59 = scmp.eq.s32.totalorder %s37, 1
      %p60 = por %p58, %p59
      %p62 = scmp.ne.s32.totalorder %s45, %s61
      %p63 = scmp.eq.s32.totalorder %s37, 0
      %p64 = por %p62, %p63
      %s66 = sadd.s32 %s65, 1
      %p69 = scmp.eq.s32.totalorder %s31, 1
      %p70 = scmp.ne.s32.totalorder %s65, %s67
      %p71 = scmp.eq.s32.totalorder %s31, 0
      %p72 = por %p70, %p71
      %p73 = scmp.ne.s32.totalorder %s65, %s67
      %p74 = scmp.eq.s32.totalorder %s36, 1
      %p75 = por %p73, %p74
      %p76 = scmp.ne.s32.totalorder %s67, %s68
      %p77 = scmp.eq.s32.totalorder %s36, 0
      %p78 = por %p76, %p77
      %p79 = scmp.ne.s32.totalorder %s67, %s68
      %p80 = scmp.eq.s32.totalorder %s37, 1
      %p81 = por %p79, %p80
      %p83 = scmp.ne.s32.totalorder %s68, %s82
      %p84 = scmp.eq.s32.totalorder %s37, 0
      %p85 = por %p83, %p84
      %s87 = sadd.s32 %s86, 1
      %p90 = scmp.eq.s32.totalorder %s31, 1
      %p91 = scmp.ne.s32.totalorder %s86, %s88
      %p92 = scmp.eq.s32.totalorder %s31, 0
      %p93 = por %p91, %p92
      %p94 = scmp.ne.s32.totalorder %s86, %s88
      %p95 = scmp.eq.s32.totalorder %s36, 1
      %p96 = por %p94, %p95
      %p97 = scmp.ne.s32.totalorder %s88, %s89
      %p98 = scmp.eq.s32.totalorder %s36, 0
      %p99 = por %p97, %p98
      %p100 = scmp.ne.s32.totalorder %s88, %s89
      %p101 = scmp.eq.s32.totalorder %s37, 1
      %p102 = por %p100, %p101
      %p104 = scmp.ne.s32.totalorder %s89, %s103
      %p105 = scmp.eq.s32.totalorder %s37, 0
      %p106 = por %p104, %p105
      %s108 = sadd.s32 %s107, 1
      %p111 = scmp.eq.s32.totalorder %s31, 1
      %p112 = scmp.ne.s32.totalorder %s107, %s109
      %p113 = scmp.eq.s32.totalorder %s31, 0
      %p114 = por %p112, %p113
      %p115 = scmp.ne.s32.totalorder %s107, %s109
      %p116 = scmp.eq.s32.totalorder %s36, 1
      %p117 = por %p115, %p116
      %p118 = scmp.ne.s32.totalorder %s109, %s110
      %p119 = scmp.eq.s32.totalorder %s36, 0
      %p120 = por %p118, %p119
      %p121 = scmp.ne.s32.totalorder %s109, %s110
      %p122 = scmp.eq.s32.totalorder %s37, 1
      %p123 = por %p121, %p122
      %p125 = scmp.ne.s32.totalorder %s110, %s124
      %p126 = scmp.eq.s32.totalorder %s37, 0
      %p127 = por %p125, %p126
      %s129 = sadd.s32 %s128, 1
      %p132 = scmp.eq.s32.totalorder %s31, 1
      %p133 = scmp.ne.s32.totalorder %s128, %s130
      %p134 = scmp.eq.s32.totalorder %s31, 0
      %p135 = por %p133, %p134
      %p136 = scmp.ne.s32.totalorder %s128, %s130
      %p137 = scmp.eq.s32.totalorder %s36, 1
      %p138 = por %p136, %p137
      %p139 = scmp.ne.s32.totalorder %s130, %s131
      %p140 = scmp.eq.s32.totalorder %s36, 0
      %p141 = por %p139, %p140
      %p142 = scmp.ne.s32.totalorder %s130, %s131
      %p143 = scmp.eq.s32.totalorder %s37, 1
      %p144 = por %p142, %p143
      %p146 = scmp.ne.s32.totalorder %s131, %s145
      %p147 = scmp.eq.s32.totalorder %s37, 0
      %p148 = por %p146, %p147
      %s150 = sadd.s32 %s149, 1
      %p153 = scmp.eq.s32.totalorder %s31, 1
      %p154 = scmp.ne.s32.totalorder %s149, %s151
      %p155 = scmp.eq.s32.totalorder %s31, 0
      %p156 = por %p154, %p155
      %p157 = scmp.ne.s32.totalorder %s149, %s151
      %p158 = scmp.eq.s32.totalorder %s36, 1
      %p159 = por %p157, %p158
      %p160 = scmp.ne.s32.totalorder %s151, %s152
      %p161 = scmp.eq.s32.totalorder %s36, 0
      %p162 = por %p160, %p161
      %p163 = scmp.ne.s32.totalorder %s151, %s152
      %p164 = scmp.eq.s32.totalorder %s37, 1
      %p165 = por %p163, %p164
      %p167 = scmp.ne.s32.totalorder %s152, %s166
      %p168 = scmp.eq.s32.totalorder %s37, 0
      %p169 = por %p167, %p168
      %s171 = sadd.s32 %s170, 1
      %p174 = scmp.eq.s32.totalorder %s31, 1
      %p175 = scmp.ne.s32.totalorder %s170, %s172
      %p176 = scmp.eq.s32.totalorder %s31, 0
      %p177 = por %p175, %p176
      %p178 = scmp.ne.s32.totalorder %s170, %s172
      %p179 = scmp.eq.s32.totalorder %s36, 1
      %p180 = por %p178, %p179
      %p181 = scmp.ne.s32.totalorder %s172, %s173
      %p182 = scmp.eq.s32.totalorder %s36, 0
      %p183 = por %p181, %p182
      %p184 = scmp.ne.s32.totalorder %s172, %s173
      %p185 = scmp.eq.s32.totalorder %s37, 1
      %p186 = por %p184, %p185
      %p188 = scmp.ne.s32.totalorder %s173, %s187
      %p189 = scmp.eq.s32.totalorder %s37, 0
      %p190 = por %p188, %p189
      %s192 = sadd.s32 %s191, 1
      %p195 = scmp.eq.s32.totalorder %s31, 1
      %p196 = scmp.ne.s32.totalorder %s191, %s193
      %p197 = scmp.eq.s32.totalorder %s31, 0
      %p198 = por %p196, %p197
      %p199 = scmp.ne.s32.totalorder %s191, %s193
      %p200 = scmp.eq.s32.totalorder %s36, 1
      %p201 = por %p199, %p200
      %p202 = scmp.ne.s32.totalorder %s193, %s194
      %p203 = scmp.eq.s32.totalorder %s36, 0
      %p204 = por %p202, %p203
      %p205 = scmp.ne.s32.totalorder %s193, %s194
      %p206 = scmp.eq.s32.totalorder %s37, 1
      %p207 = por %p205, %p206
      %p209 = scmp.ne.s32.totalorder %s194, %s208
      %p210 = scmp.eq.s32.totalorder %s37, 0
      %p211 = por %p209, %p210
      %s213 = sadd.s32 %s212, 1
      %p216 = scmp.eq.s32.totalorder %s31, 1
      %p217 = scmp.ne.s32.totalorder %s212, %s214
      %p218 = scmp.eq.s32.totalorder %s31, 0
      %p219 = por %p217, %p218
      %p220 = scmp.ne.s32.totalorder %s212, %s214
      %p221 = scmp.eq.s32.totalorder %s36, 1
      %p222 = por %p220, %p221
      %p223 = scmp.ne.s32.totalorder %s214, %s215
      %p224 = scmp.eq.s32.totalorder %s36, 0
      %p225 = por %p223, %p224
      %p226 = scmp.ne.s32.totalorder %s214, %s215
      %p227 = scmp.eq.s32.totalorder %s37, 1
      %p228 = por %p226, %p227
      %p230 = scmp.ne.s32.totalorder %s215, %s229
      %p231 = scmp.eq.s32.totalorder %s37, 0
      %p232 = por %p230, %p231
      %s234 = sadd.s32 %s233, 1
      %p237 = scmp.eq.s32.totalorder %s31, 1
      %p238 = scmp.ne.s32.totalorder %s233, %s235
      %p239 = scmp.eq.s32.totalorder %s31, 0
      %p240 = por %p238, %p239
      %p241 = scmp.ne.s32.totalorder %s233, %s235
      %p242 = scmp.eq.s32.totalorder %s36, 1
      %p243 = por %p241, %p242
      %p244 = scmp.ne.s32.totalorder %s235, %s236
      %p245 = scmp.eq.s32.totalorder %s36, 0
      %p246 = por %p244, %p245
      %p247 = scmp.ne.s32.totalorder %s235, %s236
      %p248 = scmp.eq.s32.totalorder %s37, 1
      %p249 = por %p247, %p248
      %p251 = scmp.ne.s32.totalorder %s236, %s250
      %p252 = scmp.eq.s32.totalorder %s37, 0
      %p253 = por %p251, %p252
      %s255 = sadd.s32 %s254, 1
      %p258 = scmp.eq.s32.totalorder %s31, 1
      %p259 = scmp.ne.s32.totalorder %s254, %s256
      %p260 = scmp.eq.s32.totalorder %s31, 0
      %p261 = por %p259, %p260
      %p262 = scmp.ne.s32.totalorder %s254, %s256
      %p263 = scmp.eq.s32.totalorder %s36, 1
      %p264 = por %p262, %p263
      %p265 = scmp.ne.s32.totalorder %s256, %s257
      %p266 = scmp.eq.s32.totalorder %s36, 0
      %p267 = por %p265, %p266
      %p268 = scmp.ne.s32.totalorder %s256, %s257
      %p269 = scmp.eq.s32.totalorder %s37, 1
      %p270 = por %p268, %p269
      %p272 = scmp.ne.s32.totalorder %s257, %s271
      %p273 = scmp.eq.s32.totalorder %s37, 0
      %p274 = por %p272, %p273
      %s276 = sadd.s32 %s275, 1
      %p279 = scmp.eq.s32.totalorder %s31, 1
      %p280 = scmp.ne.s32.totalorder %s275, %s277
      %p281 = scmp.eq.s32.totalorder %s31, 0
      %p282 = por %p280, %p281
      %p283 = scmp.ne.s32.totalorder %s275, %s277
      %p284 = scmp.eq.s32.totalorder %s36, 1
      %p285 = por %p283, %p284
      %p286 = scmp.ne.s32.totalorder %s277, %s278
      %p287 = scmp.eq.s32.totalorder %s36, 0
      %p288 = por %p286, %p287
      %p289 = scmp.ne.s32.totalorder %s277, %s278
      %p290 = scmp.eq.s32.totalorder %s37, 1
      %p291 = por %p289, %p290
      %p293 = scmp.ne.s32.totalorder %s278, %s292
      %p294 = scmp.eq.s32.totalorder %s37, 0
      %p295 = por %p293, %p294
      %s297 = sadd.s32 %s296, 1
      %p300 = scmp.eq.s32.totalorder %s31, 1
      %p301 = scmp.ne.s32.totalorder %s296, %s298
      %p302 = scmp.eq.s32.totalorder %s31, 0
      %p303 = por %p301, %p302
      %p304 = scmp.ne.s32.totalorder %s296, %s298
      %p305 = scmp.eq.s32.totalorder %s36, 1
      %p306 = por %p304, %p305
      %p307 = scmp.ne.s32.totalorder %s298, %s299
      %p308 = scmp.eq.s32.totalorder %s36, 0
      %p309 = por %p307, %p308
      %p310 = scmp.ne.s32.totalorder %s298, %s299
      %p311 = scmp.eq.s32.totalorder %s37, 1
      %p312 = por %p310, %p311
      %p314 = scmp.ne.s32.totalorder %s299, %s313
      %p315 = scmp.eq.s32.totalorder %s37, 0
      %p316 = por %p314, %p315
      %s318 = sadd.s32 %s317, 1
      %p321 = scmp.eq.s32.totalorder %s31, 1
      %p322 = scmp.ne.s32.totalorder %s317, %s319
      %p323 = scmp.eq.s32.totalorder %s31, 0
      %p324 = por %p322, %p323
      %p325 = scmp.ne.s32.totalorder %s317, %s319
      %p326 = scmp.eq.s32.totalorder %s36, 1
      %p327 = por %p325, %p326
      %p328 = scmp.ne.s32.totalorder %s319, %s320
      %p329 = scmp.eq.s32.totalorder %s36, 0
      %p330 = por %p328, %p329
      %p331 = scmp.ne.s32.totalorder %s319, %s320
      %p332 = scmp.eq.s32.totalorder %s37, 1
      %p333 = por %p331, %p332
      %p335 = scmp.ne.s32.totalorder %s320, %s334
      %p336 = scmp.eq.s32.totalorder %s37, 0
      %p337 = por %p335, %p336
      %s339 = sadd.s32 %s338, 1
      %p342 = scmp.eq.s32.totalorder %s31, 1
      %p343 = scmp.ne.s32.totalorder %s338, %s340
      %p344 = scmp.eq.s32.totalorder %s31, 0
      %p345 = por %p343, %p344
      %p346 = scmp.ne.s32.totalorder %s338, %s340
      %p347 = scmp.eq.s32.totalorder %s36, 1
      %p348 = por %p346, %p347
      %p349 = scmp.ne.s32.totalorder %s340, %s341
      %p350 = scmp.eq.s32.totalorder %s36, 0
      %p351 = por %p349, %p350
      %p352 = scmp.ne.s32.totalorder %s340, %s341
      %p353 = scmp.eq.s32.totalorder %s37, 1
      %p354 = por %p352, %p353
      %p356 = scmp.ne.s32.totalorder %s341, %s355
      %p357 = scmp.eq.s32.totalorder %s37, 0
      %p358 = por %p356, %p357
      %s360 = sadd.s32 %s359, 1
      %p363 = scmp.eq.s32.totalorder %s31, 1
      %p364 = scmp.ne.s32.totalorder %s359, %s361
      %p365 = scmp.eq.s32.totalorder %s31, 0
      %p366 = por %p364, %p365
      %p367 = scmp.ne.s32.totalorder %s359, %s361
      %p368 = scmp.eq.s32.totalorder %s36, 1
      %p369 = por %p367, %p368
      %p370 = scmp.ne.s32.totalorder %s361, %s362
      %p371 = scmp.eq.s32.totalorder %s36, 0
      %p372 = por %p370, %p371
      %p373 = scmp.ne.s32.totalorder %s361, %s362
      %p374 = scmp.eq.s32.totalorder %s37, 1
      %p375 = por %p373, %p374
      %p377 = scmp.ne.s32.totalorder %s362, %s376
      %p378 = scmp.eq.s32.totalorder %s37, 0
      %p379 = por %p377, %p378
      %s381 = sadd.s32 %s380, 1
      %p384 = scmp.eq.s32.totalorder %s31, 1
      %p385 = scmp.ne.s32.totalorder %s380, %s382
      %p386 = scmp.eq.s32.totalorder %s31, 0
      %p387 = por %p385, %p386
      %p388 = scmp.ne.s32.totalorder %s380, %s382
      %p389 = scmp.eq.s32.totalorder %s36, 1
      %p390 = por %p388, %p389
      %p391 = scmp.ne.s32.totalorder %s382, %s383
      %p392 = scmp.eq.s32.totalorder %s36, 0
      %p393 = por %p391, %p392
      %p394 = scmp.ne.s32.totalorder %s382, %s383
      %p395 = scmp.eq.s32.totalorder %s37, 1
      %p396 = por %p394, %p395
      %p398 = scmp.ne.s32.totalorder %s383, %s397
      %p399 = scmp.eq.s32.totalorder %s37, 0
      %p400 = por %p398, %p399
      %s402 = sadd.s32 %s401, 1
      %p405 = scmp.eq.s32.totalorder %s31, 1
      %p406 = scmp.ne.s32.totalorder %s401, %s403
      %p407 = scmp.eq.s32.totalorder %s31, 0
      %p408 = por %p406, %p407
      %p409 = scmp.ne.s32.totalorder %s401, %s403
      %p410 = scmp.eq.s32.totalorder %s36, 1
      %p411 = por %p409, %p410
      %p412 = scmp.ne.s32.totalorder %s403, %s404
      %p413 = scmp.eq.s32.totalorder %s36, 0
      %p414 = por %p412, %p413
      %p415 = scmp.ne.s32.totalorder %s403, %s404
      %p416 = scmp.eq.s32.totalorder %s37, 1
      %p417 = por %p415, %p416
      %p419 = scmp.ne.s32.totalorder %s404, %s418
      %p420 = scmp.eq.s32.totalorder %s37, 0
      %p421 = por %p419, %p420
      %s423 = sadd.s32 %s422, 1
      %p426 = scmp.eq.s32.totalorder %s31, 1
      %p427 = scmp.ne.s32.totalorder %s422, %s424
      %p428 = scmp.eq.s32.totalorder %s31, 0
      %p429 = por %p427, %p428
      %p430 = scmp.ne.s32.totalorder %s422, %s424
      %p431 = scmp.eq.s32.totalorder %s36, 1
      %p432 = por %p430, %p431
      %p433 = scmp.ne.s32.totalorder %s424, %s425
      %p434 = scmp.eq.s32.totalorder %s36, 0
      %p435 = por %p433, %p434
      %p436 = scmp.ne.s32.totalorder %s424, %s425
      %p437 = scmp.eq.s32.totalorder %s37, 1
      %p438 = por %p436, %p437
      %p440 = scmp.ne.s32.totalorder %s425, %s439
      %p441 = scmp.eq.s32.totalorder %s37, 0
      %p442 = por %p440, %p441
      %s443 = ssub.s32 %s31, %s38
      %p444 = scmp.eq.s32.totalorder %s443, 0
      %s446 = sadd.s32 %s445, 1
      %s447 = scalar_select %p444, %s445, %s446
      %p450 = pneg %p444
      %p451 = scmp.eq.s32.totalorder %s31, 1
      %p452 = por %p450, %p451
      %p453 = scmp.ne.s32.totalorder %s445, %s448
      %p454 = scmp.eq.s32.totalorder %s31, 0
      %p455 = por %p453, %p454
      %p456 = scmp.ne.s32.totalorder %s445, %s448
      %p457 = scmp.eq.s32.totalorder %s36, 1
      %p458 = por %p456, %p457
      %p459 = scmp.ne.s32.totalorder %s448, %s449
      %p460 = scmp.eq.s32.totalorder %s36, 0
      %p461 = por %p459, %p460
      %p462 = scmp.ne.s32.totalorder %s448, %s449
      %p463 = scmp.eq.s32.totalorder %s37, 1
      %p464 = por %p462, %p463
      %p466 = scmp.ne.s32.totalorder %s449, %s465
      %p467 = scmp.eq.s32.totalorder %s37, 0
      %p468 = por %p466, %p467
      %s469 = ssub.s32 %s31, %s38
      %p470 = scmp.eq.s32.totalorder %s469, 0
      %s472 = sadd.s32 %s471, 1
      %s473 = scalar_select %p470, %s471, %s472
      %p476 = pneg %p470
      %p477 = scmp.eq.s32.totalorder %s31, 1
      %p478 = por %p476, %p477
      %p479 = scmp.ne.s32.totalorder %s471, %s474
      %p480 = scmp.eq.s32.totalorder %s31, 0
      %p481 = por %p479, %p480
      %p482 = scmp.ne.s32.totalorder %s471, %s474
      %p483 = scmp.eq.s32.totalorder %s36, 1
      %p484 = por %p482, %p483
      %p485 = scmp.ne.s32.totalorder %s474, %s475
      %p486 = scmp.eq.s32.totalorder %s36, 0
      %p487 = por %p485, %p486
      %p488 = scmp.ne.s32.totalorder %s474, %s475
      %p489 = scmp.eq.s32.totalorder %s37, 1
      %p490 = por %p488, %p489
      %p492 = scmp.ne.s32.totalorder %s475, %s491
      %p493 = scmp.eq.s32.totalorder %s37, 0
      %p494 = por %p492, %p493
      %s495 = ssub.s32 %s31, %s38
      %p496 = scmp.eq.s32.totalorder %s495, 0
      %s498 = sadd.s32 %s497, 1
      %s499 = scalar_select %p496, %s497, %s498
      %p502 = pneg %p496
      %p503 = scmp.eq.s32.totalorder %s31, 1
      %p504 = por %p502, %p503
      %p505 = scmp.ne.s32.totalorder %s497, %s500
      %p506 = scmp.eq.s32.totalorder %s31, 0
      %p507 = por %p505, %p506
      %p508 = scmp.ne.s32.totalorder %s497, %s500
      %p509 = scmp.eq.s32.totalorder %s36, 1
      %p510 = por %p508, %p509
      %p511 = scmp.ne.s32.totalorder %s500, %s501
      %p512 = scmp.eq.s32.totalorder %s36, 0
      %p513 = por %p511, %p512
      %p514 = scmp.ne.s32.totalorder %s500, %s501
      %p515 = scmp.eq.s32.totalorder %s37, 1
      %p516 = por %p514, %p515
      %p518 = scmp.ne.s32.totalorder %s501, %s517
      %p519 = scmp.eq.s32.totalorder %s37, 0
      %p520 = por %p518, %p519
      %p521 = scmp.le.s32.totalorder 1, %s31
      %p522 = scmp.lt.s32.totalorder %s31, 3
      %p523 = pnand %p521, %p522
      %p524 = pneg %p523
      // Predicated region
      $region9: #{idec_forward.1} parent=5 // pred_check
        _
      $region10: #{idec_forward.1} parent=5 // pred_check_branch
        %526 = sbr.rel (%p523) target = $region12
      $region11: #{idec_forward.1} parent=5 // pred_region
        %s527 = ssub.s32 %s31, 1
        // Predicated region
        $region13: #{idec_forward.1} parent=11 // pred_check
          %p528 = pneg %p78
        $region14: #{idec_forward.1} parent=11 // pred_check_branch
          %530 = sbr.rel (%p528) target = $region16
        $region15: #{idec_forward.1} parent=11 // pred_region
          %s532 = ssub.s32 512, 512
          %533 = vsyncadd [#allocation3], %s532
          %s534 = sshll.u32 [#allocation2], 4
          %s535 = int_to_ptr.vmem [resolvable:$true] %s534
          %540 = dma.hbm_to_vmem [thread:$0]  %s1, 512, %s535, [#allocation3], 64, 64, 4
        $region16: #{idec_forward.1} parent=11 // pred_fallthru
          _
        // Predicated region
        $region17: #{idec_forward.1} parent=11 // pred_check
          %p541 = pneg %p99
        $region18: #{idec_forward.1} parent=11 // pred_check_branch
          %543 = sbr.rel (%p541) target = $region20
        $region19: #{idec_forward.1} parent=11 // pred_region
          %s545 = ssub.s32 16, 16
          %546 = vsyncadd [#allocation5], %s545
          %s548 = sshll.u32 [#allocation4], 4
          %s549 = int_to_ptr.vmem [resolvable:$true] %s548
          %551 = dma.hbm_to_vmem [thread:$0]  %s2, 16, %s549, [#allocation5]
        $region20: #{idec_forward.1} parent=11 // pred_fallthru
          _
        // Predicated region
        $region21: #{idec_forward.1} parent=11 // pred_check
          %p552 = pneg %p120
        $region22: #{idec_forward.1} parent=11 // pred_check_branch
          %554 = sbr.rel (%p552) target = $region24
        $region23: #{idec_forward.1} parent=11 // pred_region
          _
        $region24: #{idec_forward.1} parent=11 // pred_fallthru
          _
        // Predicated region
        $region25: #{idec_forward.1} parent=11 // pred_check
          %p555 = pneg %p141
        $region26: #{idec_forward.1} parent=11 // pred_check_branch
          %557 = sbr.rel (%p555) target = $region28
        $region27: #{idec_forward.1} parent=11 // pred_region
          _
        $region28: #{idec_forward.1} parent=11 // pred_fallthru
          _
        // Predicated region
        $region29: #{idec_forward.1} parent=11 // pred_check
          %p558 = pneg %p162
        $region30: #{idec_forward.1} parent=11 // pred_check_branch
          %560 = sbr.rel (%p558) target = $region32
        $region31: #{idec_forward.1} parent=11 // pred_region
          _
        $region32: #{idec_forward.1} parent=11 // pred_fallthru
          _
        // Predicated region
        $region33: #{idec_forward.1} parent=11 // pred_check
          %p561 = pneg %p183
        $region34: #{idec_forward.1} parent=11 // pred_check_branch
          %563 = sbr.rel (%p561) target = $region36
        $region35: #{idec_forward.1} parent=11 // pred_region
          _
        $region36: #{idec_forward.1} parent=11 // pred_fallthru
          _
        // Predicated region
        $region37: #{idec_forward.1} parent=11 // pred_check
          %p564 = pneg %p204
        $region38: #{idec_forward.1} parent=11 // pred_check_branch
          %566 = sbr.rel (%p564) target = $region40
        $region39: #{idec_forward.1} parent=11 // pred_region
          _
        $region40: #{idec_forward.1} parent=11 // pred_fallthru
          _
        // Predicated region
        $region41: #{idec_forward.1} parent=11 // pred_check
          %p567 = pneg %p225
        $region42: #{idec_forward.1} parent=11 // pred_check_branch
          %569 = sbr.rel (%p567) target = $region44
        $region43: #{idec_forward.1} parent=11 // pred_region
          _
        $region44: #{idec_forward.1} parent=11 // pred_fallthru
          _
        // Predicated region
        $region45: #{idec_forward.1} parent=11 // pred_check
          %p570 = pneg %p246
        $region46: #{idec_forward.1} parent=11 // pred_check_branch
          %572 = sbr.rel (%p570) target = $region48
        $region47: #{idec_forward.1} parent=11 // pred_region
          _
        $region48: #{idec_forward.1} parent=11 // pred_fallthru
          _
        // Predicated region
        $region49: #{idec_forward.1} parent=11 // pred_check
          %p573 = pneg %p267
        $region50: #{idec_forward.1} parent=11 // pred_check_branch
          %575 = sbr.rel (%p573) target = $region52
        $region51: #{idec_forward.1} parent=11 // pred_region
          _
        $region52: #{idec_forward.1} parent=11 // pred_fallthru
          _
        // Predicated region
        $region53: #{idec_forward.1} parent=11 // pred_check
          %p576 = pneg %p288
        $region54: #{idec_forward.1} parent=11 // pred_check_branch
          %578 = sbr.rel (%p576) target = $region56
        $region55: #{idec_forward.1} parent=11 // pred_region
          _
        $region56: #{idec_forward.1} parent=11 // pred_fallthru
          _
        // Predicated region
        $region57: #{idec_forward.1} parent=11 // pred_check
          %p579 = pneg %p309
        $region58: #{idec_forward.1} parent=11 // pred_check_branch
          %581 = sbr.rel (%p579) target = $region60
        $region59: #{idec_forward.1} parent=11 // pred_region
          _
        $region60: #{idec_forward.1} parent=11 // pred_fallthru
          _
        // Predicated region
        $region61: #{idec_forward.1} parent=11 // pred_check
          %p582 = pneg %p330
        $region62: #{idec_forward.1} parent=11 // pred_check_branch
          %584 = sbr.rel (%p582) target = $region64
        $region63: #{idec_forward.1} parent=11 // pred_region
          _
        $region64: #{idec_forward.1} parent=11 // pred_fallthru
          _
        // Predicated region
        $region65: #{idec_forward.1} parent=11 // pred_check
          %p585 = pneg %p351
        $region66: #{idec_forward.1} parent=11 // pred_check_branch
          %587 = sbr.rel (%p585) target = $region68
        $region67: #{idec_forward.1} parent=11 // pred_region
          _
        $region68: #{idec_forward.1} parent=11 // pred_fallthru
          _
        // Predicated region
        $region69: #{idec_forward.1} parent=11 // pred_check
          %p588 = pneg %p372
        $region70: #{idec_forward.1} parent=11 // pred_check_branch
          %590 = sbr.rel (%p588) target = $region72
        $region71: #{idec_forward.1} parent=11 // pred_region
          %s592 = ssub.s32 1024, 1024
          %593 = vsyncadd [#allocation5], %s592
          %s594 = sshll.u32 [#allocation6], 4
          %s595 = int_to_ptr.vmem [resolvable:$true] %s594
          %600 = dma.hbm_to_vmem [thread:$0]  %s15, 1024, %s595, [#allocation5], 64, 64, 4
        $region72: #{idec_forward.1} parent=11 // pred_fallthru
          _
        // Predicated region
        $region73: #{idec_forward.1} parent=11 // pred_check
          %p601 = pneg %p393
        $region74: #{idec_forward.1} parent=11 // pred_check_branch
          %603 = sbr.rel (%p601) target = $region76
        $region75: #{idec_forward.1} parent=11 // pred_region
          _
        $region76: #{idec_forward.1} parent=11 // pred_fallthru
          _
        // Predicated region
        $region77: #{idec_forward.1} parent=11 // pred_check
          %p604 = pneg %p414
        $region78: #{idec_forward.1} parent=11 // pred_check_branch
          %606 = sbr.rel (%p604) target = $region80
        $region79: #{idec_forward.1} parent=11 // pred_region
          %s608 = ssub.s32 1024, 1024
          %609 = vsyncadd [#allocation8], %s608
          %s610 = sshll.u32 [#allocation7], 4
          %s611 = int_to_ptr.vmem [resolvable:$true] %s610
          %616 = dma.hbm_to_vmem [thread:$0]  %s17, 1024, %s611, [#allocation8], 64, 64, 4
        $region80: #{idec_forward.1} parent=11 // pred_fallthru
          _
        // Predicated region
        $region81: #{idec_forward.1} parent=11 // pred_check
          %p617 = pneg %p435
        $region82: #{idec_forward.1} parent=11 // pred_check_branch
          %619 = sbr.rel (%p617) target = $region84
        $region83: #{idec_forward.1} parent=11 // pred_region
          _
        $region84: #{idec_forward.1} parent=11 // pred_fallthru
          _
      $region12: #{idec_forward.1} parent=5 // pred_fallthru
        _
      %p620 = scmp.lt.s32.totalorder %s31, 2
      // Predicated region
      $region85: #{idec_forward.1} parent=5 // pred_check
        %p621 = pneg %p620
      $region86: #{idec_forward.1} parent=5 // pred_check_branch
        %623 = sbr.rel (%p621) target = $region88
      $region87: #{idec_forward.1} parent=5 // pred_region
        // Predicated region
        $region89: #{idec_forward.1} parent=87 // pred_check
          %p624 = pneg %p51
        $region90: #{idec_forward.1} parent=87 // pred_check_branch
          %626 = sbr.rel (%p624) target = $region92
        $region91: #{idec_forward.1} parent=87 // pred_region
          %s627 = smul.u32 16, %s31
          %p628 = scmp.lt.s32.totalorder %s627, 31
          %s629 = scalar_select %p628, %s627, 31
          %s630 = smul.addr %s629, 4
          %s631 = scalar_lea.vmem %s0, %s630
          %s632 = smul.u32 16, %s31
        $region92: #{idec_forward.1} parent=87 // pred_fallthru
          _
      $region88: #{idec_forward.1} parent=5 // pred_fallthru
        _
      %p633 = scmp.le.s32.totalorder 1, %s31
      %p634 = scmp.lt.s32.totalorder %s31, 3
      %p635 = pnand %p633, %p634
      %p636 = pneg %p635
      // Predicated region
      $region93: #{idec_forward.1} parent=5 // pred_check
        _
      $region94: #{idec_forward.1} parent=5 // pred_check_branch
        %638 = sbr.rel (%p635) target = $region96
      $region95: #{idec_forward.1} parent=5 // pred_region
        %s639 = ssub.s32 %s31, 1
        // Predicated region
        $region97: #{idec_forward.1} parent=95 // pred_check
          %p640 = pneg %p78
        $region98: #{idec_forward.1} parent=95 // pred_check_branch
          %642 = sbr.rel (%p640) target = $region100
        $region99: #{idec_forward.1} parent=95 // pred_region
          %643 = dma.done [#allocation3], 512
        $region100: #{idec_forward.1} parent=95 // pred_fallthru
          _
        // Predicated region
        $region101: #{idec_forward.1} parent=95 // pred_check
          %p644 = pneg %p99
        $region102: #{idec_forward.1} parent=95 // pred_check_branch
          %646 = sbr.rel (%p644) target = $region104
        $region103: #{idec_forward.1} parent=95 // pred_region
          %647 = dma.done [#allocation5], 16
        $region104: #{idec_forward.1} parent=95 // pred_fallthru
          _
        // Predicated region
        $region105: #{idec_forward.1} parent=95 // pred_check
          %p648 = pneg %p372
        $region106: #{idec_forward.1} parent=95 // pred_check_branch
          %650 = sbr.rel (%p648) target = $region108
        $region107: #{idec_forward.1} parent=95 // pred_region
          %651 = dma.done [#allocation5], 1024
        $region108: #{idec_forward.1} parent=95 // pred_fallthru
          _
        // Predicated region
        $region109: #{idec_forward.1} parent=95 // pred_check
          %p652 = pneg %p414
        $region110: #{idec_forward.1} parent=95 // pred_check_branch
          %654 = sbr.rel (%p652) target = $region112
        $region111: #{idec_forward.1} parent=95 // pred_region
          %655 = dma.done [#allocation8], 1024
        $region112: #{idec_forward.1} parent=95 // pred_fallthru
          _
        %s656 = smul.u32 16, %s36
        %p657 = scmp.lt.s32.totalorder %s656, 31
        %s658 = scalar_select %p657, %s656, 31
        %s659 = smul.addr %s658, 4
        %s660 = scalar_lea.vmem %s0, %s659
        %p661 = pneg %p57
        %p662 = pneg %p54
        %p663 = pneg %p78
        %p664 = pneg %p75
        %p665 = pneg %p99
        %p666 = pneg %p96
        %p667 = pneg %p120
        %p668 = pneg %p117
        %p669 = pneg %p141
        %p670 = pneg %p138
        %p671 = pneg %p162
        %p672 = pneg %p159
        %p673 = pneg %p183
        %p674 = pneg %p180
        %p675 = pneg %p204
        %p676 = pneg %p201
        %p677 = pneg %p225
        %p678 = pneg %p222
        %p679 = pneg %p246
        %p680 = pneg %p243
        %p681 = pneg %p267
        %p682 = pneg %p264
        %p683 = pneg %p288
        %p684 = pneg %p285
        %p685 = pneg %p309
        %p686 = pneg %p306
        %p687 = pneg %p330
        %p688 = pneg %p327
        %p689 = pneg %p351
        %p690 = pneg %p348
        %p691 = pneg %p372
        %p692 = pneg %p369
        %p693 = pneg %p393
        %p694 = pneg %p390
        %p695 = pneg %p414
        %p696 = pneg %p411
        %p697 = pneg %p435
        %p698 = pneg %p432
        %p699 = pneg %p461
        %p700 = pneg %p458
        %s701 = smul.u32 16, %s36
        %p702 = scmp.lt.s32.totalorder %s701, 31
        %s703 = scalar_select %p702, %s701, 31
        %s704 = smul.addr %s703, 4
        %s705 = scalar_lea.vmem %s19, %s704
        %p706 = pneg %p487
        %p707 = pneg %p484
        %s708 = smul.u32 16, %s36
        %p709 = scmp.lt.s32.totalorder %s708, 31
        %s710 = scalar_select %p709, %s708, 31
        %s711 = smul.addr %s710, 8
        %s712 = scalar_lea.vmem %s20, %s711
        %p713 = pneg %p513
        %p714 = pneg %p510
        %s715 = smul.u32 16, %s36
        %p716 = scmp.lt.s32.totalorder %s715, 31
        %s717 = scalar_select %p716, %s715, 31
        %s718 = smul.addr %s717, 8
        %s719 = scalar_lea.vmem %s21, %s718
        %s720 = smul.u32 16, %s36
        %p721 = scmp.lt.s32.totalorder %s720, 31
        %s722 = scalar_select %p721, %s720, 31
        %s723 = smul.addr %s722, 4
        %s724 = scalar_lea.vmem %s0, %s723
        %s725 = smul.u32 16, %s36
        %s726 = smul.u32 16, %s36
        %p727 = scmp.lt.s32.totalorder %s726, 31
        %s728 = scalar_select %p727, %s726, 31
        %s729 = smul.addr %s728, 4
        %s730 = scalar_lea.vmem %s19, %s729
        %s731 = smul.u32 16, %s36
        %s732 = smul.u32 16, %s36
        %p733 = scmp.lt.s32.totalorder %s732, 31
        %s734 = scalar_select %p733, %s732, 31
        %s735 = smul.addr %s734, 8
        %s736 = scalar_lea.vmem %s20, %s735
        %s737 = smul.u32 16, %s36
        %s738 = smul.u32 16, %s36
        %p739 = scmp.lt.s32.totalorder %s738, 31
        %s740 = scalar_select %p739, %s738, 31
        %s741 = smul.addr %s740, 8
        %s742 = scalar_lea.vmem %s21, %s741
        %s743 = smul.u32 16, %s36
        %v745 = vld [vmem:[%s724] sm:$0xf]
        %v746 = vld [vmem:[%s724 + $0x4] sm:$0xf]
        %v747 = vld [vmem:[%s724 + $0x8] sm:$0xf]
        %v748 = vld [vmem:[%s724 + $0xc] sm:$0xf]
        %v749 = vld [vmem:[%s724 + $0x10] sm:$0xf]
        %v750 = vld [vmem:[%s724 + $0x14] sm:$0xf]
        %v751 = vld [vmem:[%s724 + $0x18] sm:$0xf]
        %v752 = vld [vmem:[%s724 + $0x1c] sm:$0xf]
        %v753 = vld [vmem:[%s724 + $0x20] sm:$0xf]
        %v754 = vld [vmem:[%s724 + $0x24] sm:$0xf]
        %v755 = vld [vmem:[%s724 + $0x28] sm:$0xf]
        %v756 = vld [vmem:[%s724 + $0x2c] sm:$0xf]
        %v757 = vld [vmem:[%s724 + $0x30] sm:$0xf]
        %v758 = vld [vmem:[%s724 + $0x34] sm:$0xf]
        %v759 = vld [vmem:[%s724 + $0x38] sm:$0xf]
        %v760 = vld [vmem:[%s724 + $0x3c] sm:$0xf]
        %v761 = vld [vmem:[#allocation2] sm:$0xf]
        %v762 = vld [vmem:[#allocation2 + $0x4] sm:$0xf]
        %v763 = vld [vmem:[#allocation2 + $0x8] sm:$0xf]
        %v764 = vld [vmem:[#allocation2 + $0xc] sm:$0xf]
        %v765 = vld [vmem:[#allocation2 + $0x10] sm:$0xf]
        %v766 = vld [vmem:[#allocation2 + $0x14] sm:$0xf]
        %v767 = vld [vmem:[#allocation2 + $0x18] sm:$0xf]
        %v768 = vld [vmem:[#allocation2 + $0x1c] sm:$0xf]
        %v769 = vld [vmem:[#allocation4] sm:$0x1]
        %v771 = vlaneseq
        %v772 = vshrl.u32 %v771, 7
        %v773 = vsub.s32 0, %v772
        %v774 = vrot.slane %v769, %v773
        %v792 = vunpack.c.l.b16 %v745
        %v793 = vunpack.c.l.b16 %v746
        %v794 = vunpack.c.l.b16 %v747
        %v795 = vunpack.c.l.b16 %v748
        %v796 = vunpack.c.l.b16 %v749
        %v797 = vunpack.c.l.b16 %v750
        %v798 = vunpack.c.l.b16 %v751
        %v799 = vunpack.c.l.b16 %v752
        %v800 = vunpack.c.l.b16 %v753
        %v801 = vunpack.c.l.b16 %v754
        %v802 = vunpack.c.l.b16 %v755
        %v803 = vunpack.c.l.b16 %v756
        %v804 = vunpack.c.l.b16 %v757
        %v805 = vunpack.c.l.b16 %v758
        %v806 = vunpack.c.l.b16 %v759
        %v807 = vunpack.c.l.b16 %v760
        %v808 = vpack.c.b16 %v793, %v792
        %v809 = vpack.c.b16 %v795, %v794
        %v810 = vpack.c.b16 %v797, %v796
        %v811 = vpack.c.b16 %v799, %v798
        %v812 = vpack.c.b16 %v801, %v800
        %v813 = vpack.c.b16 %v803, %v802
        %v814 = vpack.c.b16 %v805, %v804
        %v815 = vpack.c.b16 %v807, %v806
        %v824 = vunpack.c.l.b16 %v761
        %v825 = vunpack.c.l.b16 %v762
        %v826 = vunpack.c.l.b16 %v763
        %v827 = vunpack.c.l.b16 %v764
        %v828 = vunpack.c.l.b16 %v765
        %v829 = vunpack.c.l.b16 %v766
        %v830 = vunpack.c.l.b16 %v767
        %v831 = vunpack.c.l.b16 %v768
        %v832 = vpack.c.b16 %v825, %v824
        %v833 = vpack.c.b16 %v827, %v826
        %v834 = vpack.c.b16 %v829, %v828
        %v835 = vpack.c.b16 %v831, %v830
        %vm840 = vcmask 523264
        %v842 = vsel %vm840, %v808, 0
        %v845 = vsel %vm840, %v809, 0
        %v848 = vsel %vm840, %v810, 0
        %v851 = vsel %vm840, %v811, 0
        %v854 = vsel %vm840, %v812, 0
        %v857 = vsel %vm840, %v813, 0
        %v860 = vsel %vm840, %v814, 0
        %v863 = vsel %vm840, %v815, 0
        %865 = vmatprep.subr.bf16.mxu0 0
        %866 = vmatpush1.bf16.msra.mxu0 0
        %867 = vmatprep.subr.bf16.mxu0 0
        %868 = vmatpush1.bf16.msra.mxu0 0
        %869 = vmatprep.subr.bf16.mxu0 0
        %870 = vmatpush1.bf16.msra.mxu0 0
        %871 = vmatprep.subr.bf16.mxu0 0
        %872 = vmatpush1.bf16.msra.mxu0 0
        %873 = vmatprep.subr.bf16.mxu0 0
        %874 = vmatpush1.bf16.msra.mxu0 %v835
        %875 = vmatprep.subr.bf16.mxu0 0
        %876 = vmatpush1.bf16.msra.mxu0 %v834
        %877 = vmatprep.subr.bf16.mxu0 0
        %878 = vmatpush1.bf16.msra.mxu0 %v833
        %879 = vmatprep.subr.bf16.mxu0 0
        %880 = vmatpush1.bf16.msra.mxu0 %v832
        %881 = vmatprep.subr.bf16.mxu0 0
        %882 = vmatpush2.bf16.msra.mxu0 0
        %883 = vmatprep.subr.bf16.mxu0 0
        %884 = vmatpush2.bf16.msra.mxu0 0
        %885 = vmatprep.subr.bf16.mxu0 0
        %886 = vmatpush2.bf16.msra.mxu0 0
        %887 = vmatprep.subr.bf16.mxu0 0
        %888 = vmatpush2.bf16.msra.mxu0 0
        %889 = vmatprep.subr.bf16.mxu0 0
        %890 = vmatpush2.bf16.msra.mxu0 0
        %891 = vmatprep.subr.bf16.mxu0 0
        %892 = vmatpush2.bf16.msra.mxu0 0
        %893 = vmatprep.subr.bf16.mxu0 0
        %894 = vmatpush2.bf16.msra.mxu0 0
        %895 = vmatprep.subr.bf16.mxu0 0
        %896 = vmatpush2.bf16.msra.mxu0 0
        %897 = vmatprep.mubr.bf16.mxu0 0
        %898 = vmatmul.mubr.bf16.gmra.mxu0 %v842
        %v899 = vpop.f32.mrf.mxu0
        %v900 = vadd.f32 %v774, %v899
        %v901 = vpop.f32.mrf.mxu0
        %v902 = vpop.f32.mrf.mxu0
        %v903 = vadd.f32 %v774, %v902
        %v904 = vpop.f32.mrf.mxu0
        %905 = vmatprep.mubr.bf16.mxu0 0
        %906 = vmatmul.mubr.bf16.gmra.mxu0 %v845
        %v907 = vpop.f32.mrf.mxu0
        %v908 = vadd.f32 %v774, %v907
        %v909 = vpop.f32.mrf.mxu0
        %v910 = vpop.f32.mrf.mxu0
        %v911 = vadd.f32 %v774, %v910
        %v912 = vpop.f32.mrf.mxu0
        %913 = vmatprep.mubr.bf16.mxu0 0
        %914 = vmatmul.mubr.bf16.gmra.mxu0 %v848
        %v915 = vpop.f32.mrf.mxu0
        %v916 = vadd.f32 %v774, %v915
        %v917 = vpop.f32.mrf.mxu0
        %v918 = vpop.f32.mrf.mxu0
        %v919 = vadd.f32 %v774, %v918
        %v920 = vpop.f32.mrf.mxu0
        %921 = vmatprep.mubr.bf16.mxu0 0
        %922 = vmatmul.mubr.bf16.gmra.mxu0 %v851
        %v923 = vpop.f32.mrf.mxu0
        %v924 = vadd.f32 %v774, %v923
        %v925 = vpop.f32.mrf.mxu0
        %v926 = vpop.f32.mrf.mxu0
        %v927 = vadd.f32 %v774, %v926
        %v928 = vpop.f32.mrf.mxu0
        %929 = vmatprep.mubr.bf16.mxu0 0
        %930 = vmatmul.mubr.bf16.gmra.mxu0 %v854
        %v931 = vpop.f32.mrf.mxu0
        %v932 = vadd.f32 %v774, %v931
        %v933 = vpop.f32.mrf.mxu0
        %v934 = vpop.f32.mrf.mxu0
        %v935 = vadd.f32 %v774, %v934
        %v936 = vpop.f32.mrf.mxu0
        %937 = vmatprep.mubr.bf16.mxu0 0
        %938 = vmatmul.mubr.bf16.gmra.mxu0 %v857
        %v939 = vpop.f32.mrf.mxu0
        %v940 = vadd.f32 %v774, %v939
        %v941 = vpop.f32.mrf.mxu0
        %v942 = vpop.f32.mrf.mxu0
        %v943 = vadd.f32 %v774, %v942
        %v944 = vpop.f32.mrf.mxu0
        %945 = vmatprep.mubr.bf16.mxu0 0
        %946 = vmatmul.mubr.bf16.gmra.mxu0 %v860
        %v947 = vpop.f32.mrf.mxu0
        %v948 = vadd.f32 %v774, %v947
        %v949 = vpop.f32.mrf.mxu0
        %v950 = vpop.f32.mrf.mxu0
        %v951 = vadd.f32 %v774, %v950
        %v952 = vpop.f32.mrf.mxu0
        %953 = vmatprep.mubr.bf16.mxu0 0
        %954 = vmatmul.mubr.bf16.gmra.mxu0 %v863
        %v955 = vpop.f32.mrf.mxu0
        %v956 = vadd.f32 %v774, %v955
        %v957 = vpop.f32.mrf.mxu0
        %v958 = vpop.f32.mrf.mxu0
        %v959 = vadd.f32 %v774, %v958
        %v960 = vpop.f32.mrf.mxu0
        %961 = vdwg.mxu0
        %v962 = vpack.c.bf16 %v903, %v900
        %v963 = vpack.c.bf16 %v911, %v908
        %v964 = vpack.c.bf16 %v919, %v916
        %v965 = vpack.c.bf16 %v927, %v924
        %v966 = vpack.c.bf16 %v935, %v932
        %v967 = vpack.c.bf16 %v943, %v940
        %v968 = vpack.c.bf16 %v951, %v948
        %v969 = vpack.c.bf16 %v959, %v956
        %v970 = vmax.bf16 %v962, 0
        %v971 = vmax.bf16 %v963, 0
        %v972 = vmax.bf16 %v964, 0
        %v973 = vmax.bf16 %v965, 0
        %v974 = vmax.bf16 %v966, 0
        %v975 = vmax.bf16 %v967, 0
        %v976 = vmax.bf16 %v968, 0
        %v977 = vmax.bf16 %v969, 0
        %v978 = vld [vmem:[%s3] sm:$0xf]
        %v979 = vld [vmem:[%s3 + $0x4] sm:$0xf]
        %v980 = vld [vmem:[%s3 + $0x8] sm:$0xf]
        %v981 = vld [vmem:[%s3 + $0xc] sm:$0xf]
        %v982 = vld [vmem:[%s3 + $0x10] sm:$0xf]
        %v983 = vld [vmem:[%s3 + $0x14] sm:$0xf]
        %v984 = vld [vmem:[%s3 + $0x18] sm:$0xf]
        %v985 = vld [vmem:[%s3 + $0x1c] sm:$0xf]
        %v986 = vld [vmem:[%s3 + $0x20] sm:$0xf]
        %v987 = vld [vmem:[%s3 + $0x24] sm:$0xf]
        %v988 = vld [vmem:[%s3 + $0x28] sm:$0xf]
        %v989 = vld [vmem:[%s3 + $0x2c] sm:$0xf]
        %v990 = vld [vmem:[%s3 + $0x30] sm:$0xf]
        %v991 = vld [vmem:[%s3 + $0x34] sm:$0xf]
        %v992 = vld [vmem:[%s3 + $0x38] sm:$0xf]
        %v993 = vld [vmem:[%s3 + $0x3c] sm:$0xf]
        %v994 = vld [vmem:[%s4] sm:$0x1]
        %v996 = vlaneseq
        %v997 = vshrl.u32 %v996, 7
        %v998 = vsub.s32 0, %v997
        %v999 = vrot.slane %v994, %v998
        %v1017 = vunpack.c.l.b16 %v978
        %v1018 = vunpack.c.l.b16 %v979
        %v1019 = vunpack.c.l.b16 %v980
        %v1020 = vunpack.c.l.b16 %v981
        %v1021 = vunpack.c.l.b16 %v982
        %v1022 = vunpack.c.l.b16 %v983
        %v1023 = vunpack.c.l.b16 %v984
        %v1024 = vunpack.c.l.b16 %v985
        %v1025 = vunpack.c.l.b16 %v986
        %v1026 = vunpack.c.l.b16 %v987
        %v1027 = vunpack.c.l.b16 %v988
        %v1028 = vunpack.c.l.b16 %v989
        %v1029 = vunpack.c.l.b16 %v990
        %v1030 = vunpack.c.l.b16 %v991
        %v1031 = vunpack.c.l.b16 %v992
        %v1032 = vunpack.c.l.b16 %v993
        %v1033 = vpack.c.b16 %v1018, %v1017
        %v1034 = vpack.c.b16 %v1020, %v1019
        %v1035 = vpack.c.b16 %v1022, %v1021
        %v1036 = vpack.c.b16 %v1024, %v1023
        %v1037 = vpack.c.b16 %v1026, %v1025
        %v1038 = vpack.c.b16 %v1028, %v1027
        %v1039 = vpack.c.b16 %v1030, %v1029
        %v1040 = vpack.c.b16 %v1032, %v1031
        %1049 = vmatprep.subr.bf16.mxu0 0
        %1050 = vmatpush1.bf16.msra.mxu0 %v1040
        %1051 = vmatprep.subr.bf16.mxu0 0
        %1052 = vmatpush1.bf16.msra.mxu0 %v1039
        %1053 = vmatprep.subr.bf16.mxu0 0
        %1054 = vmatpush1.bf16.msra.mxu0 %v1038
        %1055 = vmatprep.subr.bf16.mxu0 0
        %1056 = vmatpush1.bf16.msra.mxu0 %v1037
        %1057 = vmatprep.subr.bf16.mxu0 0
        %1058 = vmatpush1.bf16.msra.mxu0 %v1036
        %1059 = vmatprep.subr.bf16.mxu0 0
        %1060 = vmatpush1.bf16.msra.mxu0 %v1035
        %1061 = vmatprep.subr.bf16.mxu0 0
        %1062 = vmatpush1.bf16.msra.mxu0 %v1034
        %1063 = vmatprep.subr.bf16.mxu0 0
        %1064 = vmatpush1.bf16.msra.mxu0 %v1033
        %1065 = vmatprep.subr.bf16.mxu0 0
        %1066 = vmatpush2.bf16.msra.mxu0 0
        %1067 = vmatprep.subr.bf16.mxu0 0
        %1068 = vmatpush2.bf16.msra.mxu0 0
        %1069 = vmatprep.subr.bf16.mxu0 0
        %1070 = vmatpush2.bf16.msra.mxu0 0
        %1071 = vmatprep.subr.bf16.mxu0 0
        %1072 = vmatpush2.bf16.msra.mxu0 0
        %1073 = vmatprep.subr.bf16.mxu0 0
        %1074 = vmatpush2.bf16.msra.mxu0 0
        %1075 = vmatprep.subr.bf16.mxu0 0
        %1076 = vmatpush2.bf16.msra.mxu0 0
        %1077 = vmatprep.subr.bf16.mxu0 0
        %1078 = vmatpush2.bf16.msra.mxu0 0
        %1079 = vmatprep.subr.bf16.mxu0 0
        %1080 = vmatpush2.bf16.msra.mxu0 0
        %1081 = vmatprep.mubr.bf16.mxu0 0
        %1082 = vmatmul.mubr.bf16.gmra.mxu0 %v970
        %v1083 = vpop.f32.mrf.mxu0
        %v1084 = vadd.f32 %v999, %v1083
        %v1085 = vpop.f32.mrf.mxu0
        %v1086 = vpop.f32.mrf.mxu0
        %v1087 = vadd.f32 %v999, %v1086
        %v1088 = vpop.f32.mrf.mxu0
        %1089 = vmatprep.mubr.bf16.mxu0 0
        %1090 = vmatmul.mubr.bf16.gmra.mxu0 %v971
        %v1091 = vpop.f32.mrf.mxu0
        %v1092 = vadd.f32 %v999, %v1091
        %v1093 = vpop.f32.mrf.mxu0
        %v1094 = vpop.f32.mrf.mxu0
        %v1095 = vadd.f32 %v999, %v1094
        %v1096 = vpop.f32.mrf.mxu0
        %1097 = vmatprep.mubr.bf16.mxu0 0
        %1098 = vmatmul.mubr.bf16.gmra.mxu0 %v972
        %v1099 = vpop.f32.mrf.mxu0
        %v1100 = vadd.f32 %v999, %v1099
        %v1101 = vpop.f32.mrf.mxu0
        %v1102 = vpop.f32.mrf.mxu0
        %v1103 = vadd.f32 %v999, %v1102
        %v1104 = vpop.f32.mrf.mxu0
        %1105 = vmatprep.mubr.bf16.mxu0 0
        %1106 = vmatmul.mubr.bf16.gmra.mxu0 %v973
        %v1107 = vpop.f32.mrf.mxu0
        %v1108 = vadd.f32 %v999, %v1107
        %v1109 = vpop.f32.mrf.mxu0
        %v1110 = vpop.f32.mrf.mxu0
        %v1111 = vadd.f32 %v999, %v1110
        %v1112 = vpop.f32.mrf.mxu0
        %1113 = vmatprep.mubr.bf16.mxu0 0
        %1114 = vmatmul.mubr.bf16.gmra.mxu0 %v974
        %v1115 = vpop.f32.mrf.mxu0
        %v1116 = vadd.f32 %v999, %v1115
        %v1117 = vpop.f32.mrf.mxu0
        %v1118 = vpop.f32.mrf.mxu0
        %v1119 = vadd.f32 %v999, %v1118
        %v1120 = vpop.f32.mrf.mxu0
        %1121 = vmatprep.mubr.bf16.mxu0 0
        %1122 = vmatmul.mubr.bf16.gmra.mxu0 %v975
        %v1123 = vpop.f32.mrf.mxu0
        %v1124 = vadd.f32 %v999, %v1123
        %v1125 = vpop.f32.mrf.mxu0
        %v1126 = vpop.f32.mrf.mxu0
        %v1127 = vadd.f32 %v999, %v1126
        %v1128 = vpop.f32.mrf.mxu0
        %1129 = vmatprep.mubr.bf16.mxu0 0
        %1130 = vmatmul.mubr.bf16.gmra.mxu0 %v976
        %v1131 = vpop.f32.mrf.mxu0
        %v1132 = vadd.f32 %v999, %v1131
        %v1133 = vpop.f32.mrf.mxu0
        %v1134 = vpop.f32.mrf.mxu0
        %v1135 = vadd.f32 %v999, %v1134
        %v1136 = vpop.f32.mrf.mxu0
        %1137 = vmatprep.mubr.bf16.mxu0 0
        %1138 = vmatmul.mubr.bf16.gmra.mxu0 %v977
        %v1139 = vpop.f32.mrf.mxu0
        %v1140 = vadd.f32 %v999, %v1139
        %v1141 = vpop.f32.mrf.mxu0
        %v1142 = vpop.f32.mrf.mxu0
        %v1143 = vadd.f32 %v999, %v1142
        %v1144 = vpop.f32.mrf.mxu0
        %1145 = vdwg.mxu0
        %v1146 = vpack.c.bf16 %v1087, %v1084
        %v1147 = vpack.c.bf16 %v1095, %v1092
        %v1148 = vpack.c.bf16 %v1103, %v1100
        %v1149 = vpack.c.bf16 %v1111, %v1108
        %v1150 = vpack.c.bf16 %v1119, %v1116
        %v1151 = vpack.c.bf16 %v1127, %v1124
        %v1152 = vpack.c.bf16 %v1135, %v1132
        %v1153 = vpack.c.bf16 %v1143, %v1140
        %v1154 = vmax.bf16 %v1146, 0
        %v1155 = vmax.bf16 %v1147, 0
        %v1156 = vmax.bf16 %v1148, 0
        %v1157 = vmax.bf16 %v1149, 0
        %v1158 = vmax.bf16 %v1150, 0
        %v1159 = vmax.bf16 %v1151, 0
        %v1160 = vmax.bf16 %v1152, 0
        %v1161 = vmax.bf16 %v1153, 0
        %v1162 = vld [vmem:[%s5] sm:$0xf]
        %v1163 = vld [vmem:[%s5 + $0x4] sm:$0xf]
        %v1164 = vld [vmem:[%s5 + $0x8] sm:$0xf]
        %v1165 = vld [vmem:[%s5 + $0xc] sm:$0xf]
        %v1166 = vld [vmem:[%s5 + $0x10] sm:$0xf]
        %v1167 = vld [vmem:[%s5 + $0x14] sm:$0xf]
        %v1168 = vld [vmem:[%s5 + $0x18] sm:$0xf]
        %v1169 = vld [vmem:[%s5 + $0x1c] sm:$0xf]
        %v1170 = vld [vmem:[%s5 + $0x20] sm:$0xf]
        %v1171 = vld [vmem:[%s5 + $0x24] sm:$0xf]
        %v1172 = vld [vmem:[%s5 + $0x28] sm:$0xf]
        %v1173 = vld [vmem:[%s5 + $0x2c] sm:$0xf]
        %v1174 = vld [vmem:[%s5 + $0x30] sm:$0xf]
        %v1175 = vld [vmem:[%s5 + $0x34] sm:$0xf]
        %v1176 = vld [vmem:[%s5 + $0x38] sm:$0xf]
        %v1177 = vld [vmem:[%s5 + $0x3c] sm:$0xf]
        %v1178 = vld [vmem:[%s6] sm:$0x1]
        %v1180 = vlaneseq
        %v1181 = vshrl.u32 %v1180, 7
        %v1182 = vsub.s32 0, %v1181
        %v1183 = vrot.slane %v1178, %v1182
        %v1201 = vunpack.c.l.b16 %v1162
        %v1202 = vunpack.c.l.b16 %v1163
        %v1203 = vunpack.c.l.b16 %v1164
        %v1204 = vunpack.c.l.b16 %v1165
        %v1205 = vunpack.c.l.b16 %v1166
        %v1206 = vunpack.c.l.b16 %v1167
        %v1207 = vunpack.c.l.b16 %v1168
        %v1208 = vunpack.c.l.b16 %v1169
        %v1209 = vunpack.c.l.b16 %v1170
        %v1210 = vunpack.c.l.b16 %v1171
        %v1211 = vunpack.c.l.b16 %v1172
        %v1212 = vunpack.c.l.b16 %v1173
        %v1213 = vunpack.c.l.b16 %v1174
        %v1214 = vunpack.c.l.b16 %v1175
        %v1215 = vunpack.c.l.b16 %v1176
        %v1216 = vunpack.c.l.b16 %v1177
        %v1217 = vpack.c.b16 %v1202, %v1201
        %v1218 = vpack.c.b16 %v1204, %v1203
        %v1219 = vpack.c.b16 %v1206, %v1205
        %v1220 = vpack.c.b16 %v1208, %v1207
        %v1221 = vpack.c.b16 %v1210, %v1209
        %v1222 = vpack.c.b16 %v1212, %v1211
        %v1223 = vpack.c.b16 %v1214, %v1213
        %v1224 = vpack.c.b16 %v1216, %v1215
        %1233 = vmatprep.subr.bf16.mxu0 0
        %1234 = vmatpush1.bf16.msra.mxu0 %v1224
        %1235 = vmatprep.subr.bf16.mxu0 0
        %1236 = vmatpush1.bf16.msra.mxu0 %v1223
        %1237 = vmatprep.subr.bf16.mxu0 0
        %1238 = vmatpush1.bf16.msra.mxu0 %v1222
        %1239 = vmatprep.subr.bf16.mxu0 0
        %1240 = vmatpush1.bf16.msra.mxu0 %v1221
        %1241 = vmatprep.subr.bf16.mxu0 0
        %1242 = vmatpush1.bf16.msra.mxu0 %v1220
        %1243 = vmatprep.subr.bf16.mxu0 0
        %1244 = vmatpush1.bf16.msra.mxu0 %v1219
        %1245 = vmatprep.subr.bf16.mxu0 0
        %1246 = vmatpush1.bf16.msra.mxu0 %v1218
        %1247 = vmatprep.subr.bf16.mxu0 0
        %1248 = vmatpush1.bf16.msra.mxu0 %v1217
        %1249 = vmatprep.subr.bf16.mxu0 0
        %1250 = vmatpush2.bf16.msra.mxu0 0
        %1251 = vmatprep.subr.bf16.mxu0 0
        %1252 = vmatpush2.bf16.msra.mxu0 0
        %1253 = vmatprep.subr.bf16.mxu0 0
        %1254 = vmatpush2.bf16.msra.mxu0 0
        %1255 = vmatprep.subr.bf16.mxu0 0
        %1256 = vmatpush2.bf16.msra.mxu0 0
        %1257 = vmatprep.subr.bf16.mxu0 0
        %1258 = vmatpush2.bf16.msra.mxu0 0
        %1259 = vmatprep.subr.bf16.mxu0 0
        %1260 = vmatpush2.bf16.msra.mxu0 0
        %1261 = vmatprep.subr.bf16.mxu0 0
        %1262 = vmatpush2.bf16.msra.mxu0 0
        %1263 = vmatprep.subr.bf16.mxu0 0
        %1264 = vmatpush2.bf16.msra.mxu0 0
        %1265 = vmatprep.mubr.bf16.mxu0 0
        %1266 = vmatmul.mubr.bf16.gmra.mxu0 %v1154
        %v1267 = vpop.f32.mrf.mxu0
        %v1268 = vadd.f32 %v1183, %v1267
        %v1269 = vpop.f32.mrf.mxu0
        %v1270 = vpop.f32.mrf.mxu0
        %v1271 = vadd.f32 %v1183, %v1270
        %v1272 = vpop.f32.mrf.mxu0
        %1273 = vmatprep.mubr.bf16.mxu0 0
        %1274 = vmatmul.mubr.bf16.gmra.mxu0 %v1155
        %v1275 = vpop.f32.mrf.mxu0
        %v1276 = vadd.f32 %v1183, %v1275
        %v1277 = vpop.f32.mrf.mxu0
        %v1278 = vpop.f32.mrf.mxu0
        %v1279 = vadd.f32 %v1183, %v1278
        %v1280 = vpop.f32.mrf.mxu0
        %1281 = vmatprep.mubr.bf16.mxu0 0
        %1282 = vmatmul.mubr.bf16.gmra.mxu0 %v1156
        %v1283 = vpop.f32.mrf.mxu0
        %v1284 = vadd.f32 %v1183, %v1283
        %v1285 = vpop.f32.mrf.mxu0
        %v1286 = vpop.f32.mrf.mxu0
        %v1287 = vadd.f32 %v1183, %v1286
        %v1288 = vpop.f32.mrf.mxu0
        %1289 = vmatprep.mubr.bf16.mxu0 0
        %1290 = vmatmul.mubr.bf16.gmra.mxu0 %v1157
        %v1291 = vpop.f32.mrf.mxu0
        %v1292 = vadd.f32 %v1183, %v1291
        %v1293 = vpop.f32.mrf.mxu0
        %v1294 = vpop.f32.mrf.mxu0
        %v1295 = vadd.f32 %v1183, %v1294
        %v1296 = vpop.f32.mrf.mxu0
        %1297 = vmatprep.mubr.bf16.mxu0 0
        %1298 = vmatmul.mubr.bf16.gmra.mxu0 %v1158
        %v1299 = vpop.f32.mrf.mxu0
        %v1300 = vadd.f32 %v1183, %v1299
        %v1301 = vpop.f32.mrf.mxu0
        %v1302 = vpop.f32.mrf.mxu0
        %v1303 = vadd.f32 %v1183, %v1302
        %v1304 = vpop.f32.mrf.mxu0
        %1305 = vmatprep.mubr.bf16.mxu0 0
        %1306 = vmatmul.mubr.bf16.gmra.mxu0 %v1159
        %v1307 = vpop.f32.mrf.mxu0
        %v1308 = vadd.f32 %v1183, %v1307
        %v1309 = vpop.f32.mrf.mxu0
        %v1310 = vpop.f32.mrf.mxu0
        %v1311 = vadd.f32 %v1183, %v1310
        %v1312 = vpop.f32.mrf.mxu0
        %1313 = vmatprep.mubr.bf16.mxu0 0
        %1314 = vmatmul.mubr.bf16.gmra.mxu0 %v1160
        %v1315 = vpop.f32.mrf.mxu0
        %v1316 = vadd.f32 %v1183, %v1315
        %v1317 = vpop.f32.mrf.mxu0
        %v1318 = vpop.f32.mrf.mxu0
        %v1319 = vadd.f32 %v1183, %v1318
        %v1320 = vpop.f32.mrf.mxu0
        %1321 = vmatprep.mubr.bf16.mxu0 0
        %1322 = vmatmul.mubr.bf16.gmra.mxu0 %v1161
        %v1323 = vpop.f32.mrf.mxu0
        %v1324 = vadd.f32 %v1183, %v1323
        %v1325 = vpop.f32.mrf.mxu0
        %v1326 = vpop.f32.mrf.mxu0
        %v1327 = vadd.f32 %v1183, %v1326
        %v1328 = vpop.f32.mrf.mxu0
        %1329 = vdwg.mxu0
        %v1330 = vpack.c.bf16 %v1271, %v1268
        %v1331 = vpack.c.bf16 %v1279, %v1276
        %v1332 = vpack.c.bf16 %v1287, %v1284
        %v1333 = vpack.c.bf16 %v1295, %v1292
        %v1334 = vpack.c.bf16 %v1303, %v1300
        %v1335 = vpack.c.bf16 %v1311, %v1308
        %v1336 = vpack.c.bf16 %v1319, %v1316
        %v1337 = vpack.c.bf16 %v1327, %v1324
        %v1338 = vmax.bf16 %v1330, 0
        %v1339 = vmax.bf16 %v1331, 0
        %v1340 = vmax.bf16 %v1332, 0
        %v1341 = vmax.bf16 %v1333, 0
        %v1342 = vmax.bf16 %v1334, 0
        %v1343 = vmax.bf16 %v1335, 0
        %v1344 = vmax.bf16 %v1336, 0
        %v1345 = vmax.bf16 %v1337, 0
        %v1346 = vld [vmem:[%s7] sm:$0xf]
        %v1347 = vld [vmem:[%s7 + $0x4] sm:$0xf]
        %v1348 = vld [vmem:[%s7 + $0x8] sm:$0xf]
        %v1349 = vld [vmem:[%s7 + $0xc] sm:$0xf]
        %v1350 = vld [vmem:[%s7 + $0x10] sm:$0xf]
        %v1351 = vld [vmem:[%s7 + $0x14] sm:$0xf]
        %v1352 = vld [vmem:[%s7 + $0x18] sm:$0xf]
        %v1353 = vld [vmem:[%s7 + $0x1c] sm:$0xf]
        %v1354 = vld [vmem:[%s7 + $0x20] sm:$0xf]
        %v1355 = vld [vmem:[%s7 + $0x24] sm:$0xf]
        %v1356 = vld [vmem:[%s7 + $0x28] sm:$0xf]
        %v1357 = vld [vmem:[%s7 + $0x2c] sm:$0xf]
        %v1358 = vld [vmem:[%s7 + $0x30] sm:$0xf]
        %v1359 = vld [vmem:[%s7 + $0x34] sm:$0xf]
        %v1360 = vld [vmem:[%s7 + $0x38] sm:$0xf]
        %v1361 = vld [vmem:[%s7 + $0x3c] sm:$0xf]
        %v1362 = vld [vmem:[%s8] sm:$0x1]
        %v1364 = vlaneseq
        %v1365 = vshrl.u32 %v1364, 7
        %v1366 = vsub.s32 0, %v1365
        %v1367 = vrot.slane %v1362, %v1366
        %v1385 = vunpack.c.l.b16 %v1346
        %v1386 = vunpack.c.l.b16 %v1347
        %v1387 = vunpack.c.l.b16 %v1348
        %v1388 = vunpack.c.l.b16 %v1349
        %v1389 = vunpack.c.l.b16 %v1350
        %v1390 = vunpack.c.l.b16 %v1351
        %v1391 = vunpack.c.l.b16 %v1352
        %v1392 = vunpack.c.l.b16 %v1353
        %v1393 = vunpack.c.l.b16 %v1354
        %v1394 = vunpack.c.l.b16 %v1355
        %v1395 = vunpack.c.l.b16 %v1356
        %v1396 = vunpack.c.l.b16 %v1357
        %v1397 = vunpack.c.l.b16 %v1358
        %v1398 = vunpack.c.l.b16 %v1359
        %v1399 = vunpack.c.l.b16 %v1360
        %v1400 = vunpack.c.l.b16 %v1361
        %v1401 = vpack.c.b16 %v1386, %v1385
        %v1402 = vpack.c.b16 %v1388, %v1387
        %v1403 = vpack.c.b16 %v1390, %v1389
        %v1404 = vpack.c.b16 %v1392, %v1391
        %v1405 = vpack.c.b16 %v1394, %v1393
        %v1406 = vpack.c.b16 %v1396, %v1395
        %v1407 = vpack.c.b16 %v1398, %v1397
        %v1408 = vpack.c.b16 %v1400, %v1399
        %1417 = vmatprep.subr.bf16.mxu0 0
        %1418 = vmatpush1.bf16.msra.mxu0 %v1408
        %1419 = vmatprep.subr.bf16.mxu0 0
        %1420 = vmatpush1.bf16.msra.mxu0 %v1407
        %1421 = vmatprep.subr.bf16.mxu0 0
        %1422 = vmatpush1.bf16.msra.mxu0 %v1406
        %1423 = vmatprep.subr.bf16.mxu0 0
        %1424 = vmatpush1.bf16.msra.mxu0 %v1405
        %1425 = vmatprep.subr.bf16.mxu0 0
        %1426 = vmatpush1.bf16.msra.mxu0 %v1404
        %1427 = vmatprep.subr.bf16.mxu0 0
        %1428 = vmatpush1.bf16.msra.mxu0 %v1403
        %1429 = vmatprep.subr.bf16.mxu0 0
        %1430 = vmatpush1.bf16.msra.mxu0 %v1402
        %1431 = vmatprep.subr.bf16.mxu0 0
        %1432 = vmatpush1.bf16.msra.mxu0 %v1401
        %1433 = vmatprep.subr.bf16.mxu0 0
        %1434 = vmatpush2.bf16.msra.mxu0 0
        %1435 = vmatprep.subr.bf16.mxu0 0
        %1436 = vmatpush2.bf16.msra.mxu0 0
        %1437 = vmatprep.subr.bf16.mxu0 0
        %1438 = vmatpush2.bf16.msra.mxu0 0
        %1439 = vmatprep.subr.bf16.mxu0 0
        %1440 = vmatpush2.bf16.msra.mxu0 0
        %1441 = vmatprep.subr.bf16.mxu0 0
        %1442 = vmatpush2.bf16.msra.mxu0 0
        %1443 = vmatprep.subr.bf16.mxu0 0
        %1444 = vmatpush2.bf16.msra.mxu0 0
        %1445 = vmatprep.subr.bf16.mxu0 0
        %1446 = vmatpush2.bf16.msra.mxu0 0
        %1447 = vmatprep.subr.bf16.mxu0 0
        %1448 = vmatpush2.bf16.msra.mxu0 0
        %1449 = vmatprep.mubr.bf16.mxu0 0
        %1450 = vmatmul.mubr.bf16.gmra.mxu0 %v1338
        %v1451 = vpop.f32.mrf.mxu0
        %v1452 = vadd.f32 %v1367, %v1451
        %v1453 = vpop.f32.mrf.mxu0
        %v1454 = vpop.f32.mrf.mxu0
        %v1455 = vadd.f32 %v1367, %v1454
        %v1456 = vpop.f32.mrf.mxu0
        %1457 = vmatprep.mubr.bf16.mxu0 0
        %1458 = vmatmul.mubr.bf16.gmra.mxu0 %v1339
        %v1459 = vpop.f32.mrf.mxu0
        %v1460 = vadd.f32 %v1367, %v1459
        %v1461 = vpop.f32.mrf.mxu0
        %v1462 = vpop.f32.mrf.mxu0
        %v1463 = vadd.f32 %v1367, %v1462
        %v1464 = vpop.f32.mrf.mxu0
        %1465 = vmatprep.mubr.bf16.mxu0 0
        %1466 = vmatmul.mubr.bf16.gmra.mxu0 %v1340
        %v1467 = vpop.f32.mrf.mxu0
        %v1468 = vadd.f32 %v1367, %v1467
        %v1469 = vpop.f32.mrf.mxu0
        %v1470 = vpop.f32.mrf.mxu0
        %v1471 = vadd.f32 %v1367, %v1470
        %v1472 = vpop.f32.mrf.mxu0
        %1473 = vmatprep.mubr.bf16.mxu0 0
        %1474 = vmatmul.mubr.bf16.gmra.mxu0 %v1341
        %v1475 = vpop.f32.mrf.mxu0
        %v1476 = vadd.f32 %v1367, %v1475
        %v1477 = vpop.f32.mrf.mxu0
        %v1478 = vpop.f32.mrf.mxu0
        %v1479 = vadd.f32 %v1367, %v1478
        %v1480 = vpop.f32.mrf.mxu0
        %1481 = vmatprep.mubr.bf16.mxu0 0
        %1482 = vmatmul.mubr.bf16.gmra.mxu0 %v1342
        %v1483 = vpop.f32.mrf.mxu0
        %v1484 = vadd.f32 %v1367, %v1483
        %v1485 = vpop.f32.mrf.mxu0
        %v1486 = vpop.f32.mrf.mxu0
        %v1487 = vadd.f32 %v1367, %v1486
        %v1488 = vpop.f32.mrf.mxu0
        %1489 = vmatprep.mubr.bf16.mxu0 0
        %1490 = vmatmul.mubr.bf16.gmra.mxu0 %v1343
        %v1491 = vpop.f32.mrf.mxu0
        %v1492 = vadd.f32 %v1367, %v1491
        %v1493 = vpop.f32.mrf.mxu0
        %v1494 = vpop.f32.mrf.mxu0
        %v1495 = vadd.f32 %v1367, %v1494
        %v1496 = vpop.f32.mrf.mxu0
        %1497 = vmatprep.mubr.bf16.mxu0 0
        %1498 = vmatmul.mubr.bf16.gmra.mxu0 %v1344
        %v1499 = vpop.f32.mrf.mxu0
        %v1500 = vadd.f32 %v1367, %v1499
        %v1501 = vpop.f32.mrf.mxu0
        %v1502 = vpop.f32.mrf.mxu0
        %v1503 = vadd.f32 %v1367, %v1502
        %v1504 = vpop.f32.mrf.mxu0
        %1505 = vmatprep.mubr.bf16.mxu0 0
        %1506 = vmatmul.mubr.bf16.gmra.mxu0 %v1345
        %v1507 = vpop.f32.mrf.mxu0
        %v1508 = vadd.f32 %v1367, %v1507
        %v1509 = vpop.f32.mrf.mxu0
        %v1510 = vpop.f32.mrf.mxu0
        %v1511 = vadd.f32 %v1367, %v1510
        %v1512 = vpop.f32.mrf.mxu0
        %1513 = vdwg.mxu0
        %1514 = vst [vmem:[%s742] sm:$0xff] %v1452
        %1515 = vst [vmem:[%s742 + $0x8] sm:$0xff] %v1455
        %1516 = vst [vmem:[%s742 + $0x10] sm:$0xff] %v1460
        %1517 = vst [vmem:[%s742 + $0x18] sm:$0xff] %v1463
        %1518 = vst [vmem:[%s742 + $0x20] sm:$0xff] %v1468
        %1519 = vst [vmem:[%s742 + $0x28] sm:$0xff] %v1471
        %1520 = vst [vmem:[%s742 + $0x30] sm:$0xff] %v1476
        %1521 = vst [vmem:[%s742 + $0x38] sm:$0xff] %v1479
        %1522 = vst [vmem:[%s742 + $0x40] sm:$0xff] %v1484
        %1523 = vst [vmem:[%s742 + $0x48] sm:$0xff] %v1487
        %1524 = vst [vmem:[%s742 + $0x50] sm:$0xff] %v1492
        %1525 = vst [vmem:[%s742 + $0x58] sm:$0xff] %v1495
        %1526 = vst [vmem:[%s742 + $0x60] sm:$0xff] %v1500
        %1527 = vst [vmem:[%s742 + $0x68] sm:$0xff] %v1503
        %1528 = vst [vmem:[%s742 + $0x70] sm:$0xff] %v1508
        %1529 = vst [vmem:[%s742 + $0x78] sm:$0xff] %v1511
        %v1530 = vpack.c.bf16 %v1455, %v1452
        %v1531 = vpack.c.bf16 %v1463, %v1460
        %v1532 = vpack.c.bf16 %v1471, %v1468
        %v1533 = vpack.c.bf16 %v1479, %v1476
        %v1534 = vpack.c.bf16 %v1487, %v1484
        %v1535 = vpack.c.bf16 %v1495, %v1492
        %v1536 = vpack.c.bf16 %v1503, %v1500
        %v1537 = vpack.c.bf16 %v1511, %v1508
        %v1538 = vmul.f32 %v1452, %v1452
        %v1539 = vmul.f32 %v1455, %v1455
        %v1540 = vmul.f32 %v1460, %v1460
        %v1541 = vmul.f32 %v1463, %v1463
        %v1542 = vmul.f32 %v1468, %v1468
        %v1543 = vmul.f32 %v1471, %v1471
        %v1544 = vmul.f32 %v1476, %v1476
        %v1545 = vmul.f32 %v1479, %v1479
        %v1546 = vmul.f32 %v1484, %v1484
        %v1547 = vmul.f32 %v1487, %v1487
        %v1548 = vmul.f32 %v1492, %v1492
        %v1549 = vmul.f32 %v1495, %v1495
        %v1550 = vmul.f32 %v1500, %v1500
        %v1551 = vmul.f32 %v1503, %v1503
        %v1552 = vmul.f32 %v1508, %v1508
        %v1553 = vmul.f32 %v1511, %v1511
        %1554 = vadd.xlane.f32.xlu0 %v1538
        %v1555 = vpop.xlane.xlu0 %1554
        %1556 = vadd.xlane.f32.xlu0 %v1539
        %v1557 = vpop.xlane.xlu0 %1556
        %1558 = vadd.xlane.f32.xlu0 %v1540
        %v1559 = vpop.xlane.xlu0 %1558
        %1560 = vadd.xlane.f32.xlu0 %v1541
        %v1561 = vpop.xlane.xlu0 %1560
        %1562 = vadd.xlane.f32.xlu0 %v1542
        %v1563 = vpop.xlane.xlu0 %1562
        %1564 = vadd.xlane.f32.xlu0 %v1543
        %v1565 = vpop.xlane.xlu0 %1564
        %1566 = vadd.xlane.f32.xlu0 %v1544
        %v1567 = vpop.xlane.xlu0 %1566
        %1568 = vadd.xlane.f32.xlu0 %v1545
        %v1569 = vpop.xlane.xlu0 %1568
        %1570 = vadd.xlane.f32.xlu0 %v1546
        %v1571 = vpop.xlane.xlu0 %1570
        %1572 = vadd.xlane.f32.xlu0 %v1547
        %v1573 = vpop.xlane.xlu0 %1572
        %1574 = vadd.xlane.f32.xlu0 %v1548
        %v1575 = vpop.xlane.xlu0 %1574
        %1576 = vadd.xlane.f32.xlu0 %v1549
        %v1577 = vpop.xlane.xlu0 %1576
        %1578 = vadd.xlane.f32.xlu0 %v1550
        %v1579 = vpop.xlane.xlu0 %1578
        %1580 = vadd.xlane.f32.xlu0 %v1551
        %v1581 = vpop.xlane.xlu0 %1580
        %1582 = vadd.xlane.f32.xlu0 %v1552
        %v1583 = vpop.xlane.xlu0 %1582
        %1584 = vadd.xlane.f32.xlu0 %v1553
        %v1585 = vpop.xlane.xlu0 %1584
        %v1586 = vld [vmem:[#allocation7] sm:$0xf]
        %v1587 = vld [vmem:[#allocation7 + $0x4] sm:$0xf]
        %v1588 = vld [vmem:[#allocation7 + $0x8] sm:$0xf]
        %v1589 = vld [vmem:[#allocation7 + $0xc] sm:$0xf]
        %v1590 = vld [vmem:[#allocation7 + $0x10] sm:$0xf]
        %v1591 = vld [vmem:[#allocation7 + $0x14] sm:$0xf]
        %v1592 = vld [vmem:[#allocation7 + $0x18] sm:$0xf]
        %v1593 = vld [vmem:[#allocation7 + $0x1c] sm:$0xf]
        %v1594 = vld [vmem:[#allocation7 + $0x20] sm:$0xf]
        %v1595 = vld [vmem:[#allocation7 + $0x24] sm:$0xf]
        %v1596 = vld [vmem:[#allocation7 + $0x28] sm:$0xf]
        %v1597 = vld [vmem:[#allocation7 + $0x2c] sm:$0xf]
        %v1598 = vld [vmem:[#allocation7 + $0x30] sm:$0xf]
        %v1599 = vld [vmem:[#allocation7 + $0x34] sm:$0xf]
        %v1600 = vld [vmem:[#allocation7 + $0x38] sm:$0xf]
        %v1601 = vld [vmem:[#allocation7 + $0x3c] sm:$0xf]
        %v1618 = vunpack.c.l.b16 %v1586
        %v1619 = vunpack.c.l.b16 %v1587
        %v1620 = vunpack.c.l.b16 %v1588
        %v1621 = vunpack.c.l.b16 %v1589
        %v1622 = vunpack.c.l.b16 %v1590
        %v1623 = vunpack.c.l.b16 %v1591
        %v1624 = vunpack.c.l.b16 %v1592
        %v1625 = vunpack.c.l.b16 %v1593
        %v1626 = vunpack.c.l.b16 %v1594
        %v1627 = vunpack.c.l.b16 %v1595
        %v1628 = vunpack.c.l.b16 %v1596
        %v1629 = vunpack.c.l.b16 %v1597
        %v1630 = vunpack.c.l.b16 %v1598
        %v1631 = vunpack.c.l.b16 %v1599
        %v1632 = vunpack.c.l.b16 %v1600
        %v1633 = vunpack.c.l.b16 %v1601
        %v1634 = vpack.c.b16 %v1619, %v1618
        %v1635 = vpack.c.b16 %v1621, %v1620
        %v1636 = vpack.c.b16 %v1623, %v1622
        %v1637 = vpack.c.b16 %v1625, %v1624
        %v1638 = vpack.c.b16 %v1627, %v1626
        %v1639 = vpack.c.b16 %v1629, %v1628
        %v1640 = vpack.c.b16 %v1631, %v1630
        %v1641 = vpack.c.b16 %v1633, %v1632
        %1650 = vmatprep.subr.bf16.mxu0 0
        %1651 = vmatpush1.bf16.msra.mxu0 %v1641
        %1652 = vmatprep.subr.bf16.mxu0 0
        %1653 = vmatpush1.bf16.msra.mxu0 %v1640
        %1654 = vmatprep.subr.bf16.mxu0 0
        %1655 = vmatpush1.bf16.msra.mxu0 %v1639
        %1656 = vmatprep.subr.bf16.mxu0 0
        %1657 = vmatpush1.bf16.msra.mxu0 %v1638
        %1658 = vmatprep.subr.bf16.mxu0 0
        %1659 = vmatpush1.bf16.msra.mxu0 %v1637
        %1660 = vmatprep.subr.bf16.mxu0 0
        %1661 = vmatpush1.bf16.msra.mxu0 %v1636
        %1662 = vmatprep.subr.bf16.mxu0 0
        %1663 = vmatpush1.bf16.msra.mxu0 %v1635
        %1664 = vmatprep.subr.bf16.mxu0 0
        %1665 = vmatpush1.bf16.msra.mxu0 %v1634
        %1666 = vmatprep.subr.bf16.mxu0 0
        %1667 = vmatpush2.bf16.msra.mxu0 0
        %1668 = vmatprep.subr.bf16.mxu0 0
        %1669 = vmatpush2.bf16.msra.mxu0 0
        %1670 = vmatprep.subr.bf16.mxu0 0
        %1671 = vmatpush2.bf16.msra.mxu0 0
        %1672 = vmatprep.subr.bf16.mxu0 0
        %1673 = vmatpush2.bf16.msra.mxu0 0
        %1674 = vmatprep.subr.bf16.mxu0 0
        %1675 = vmatpush2.bf16.msra.mxu0 0
        %1676 = vmatprep.subr.bf16.mxu0 0
        %1677 = vmatpush2.bf16.msra.mxu0 0
        %1678 = vmatprep.subr.bf16.mxu0 0
        %1679 = vmatpush2.bf16.msra.mxu0 0
        %1680 = vmatprep.subr.bf16.mxu0 0
        %1681 = vmatpush2.bf16.msra.mxu0 0
        %1682 = vmatprep.mubr.bf16.mxu0 0
        %1683 = vmatmul.mubr.bf16.gmra.mxu0 %v1530
        %v1684 = vpop.f32.mrf.mxu0
        %v1685 = vadd.f32 0.0, %v1684
        %v1686 = vpop.f32.mrf.mxu0
        %v1687 = vpop.f32.mrf.mxu0
        %v1688 = vadd.f32 0.0, %v1687
        %v1689 = vpop.f32.mrf.mxu0
        %1690 = vmatprep.mubr.bf16.mxu0 0
        %1691 = vmatmul.mubr.bf16.gmra.mxu0 %v1531
        %v1692 = vpop.f32.mrf.mxu0
        %v1693 = vadd.f32 0.0, %v1692
        %v1694 = vpop.f32.mrf.mxu0
        %v1695 = vpop.f32.mrf.mxu0
        %v1696 = vadd.f32 0.0, %v1695
        %v1697 = vpop.f32.mrf.mxu0
        %1698 = vmatprep.mubr.bf16.mxu0 0
        %1699 = vmatmul.mubr.bf16.gmra.mxu0 %v1532
        %v1700 = vpop.f32.mrf.mxu0
        %v1701 = vadd.f32 0.0, %v1700
        %v1702 = vpop.f32.mrf.mxu0
        %v1703 = vpop.f32.mrf.mxu0
        %v1704 = vadd.f32 0.0, %v1703
        %v1705 = vpop.f32.mrf.mxu0
        %1706 = vmatprep.mubr.bf16.mxu0 0
        %1707 = vmatmul.mubr.bf16.gmra.mxu0 %v1533
        %v1708 = vpop.f32.mrf.mxu0
        %v1709 = vadd.f32 0.0, %v1708
        %v1710 = vpop.f32.mrf.mxu0
        %v1711 = vpop.f32.mrf.mxu0
        %v1712 = vadd.f32 0.0, %v1711
        %v1713 = vpop.f32.mrf.mxu0
        %1714 = vmatprep.mubr.bf16.mxu0 0
        %1715 = vmatmul.mubr.bf16.gmra.mxu0 %v1534
        %v1716 = vpop.f32.mrf.mxu0
        %v1717 = vadd.f32 0.0, %v1716
        %v1718 = vpop.f32.mrf.mxu0
        %v1719 = vpop.f32.mrf.mxu0
        %v1720 = vadd.f32 0.0, %v1719
        %v1721 = vpop.f32.mrf.mxu0
        %1722 = vmatprep.mubr.bf16.mxu0 0
        %1723 = vmatmul.mubr.bf16.gmra.mxu0 %v1535
        %v1724 = vpop.f32.mrf.mxu0
        %v1725 = vadd.f32 0.0, %v1724
        %v1726 = vpop.f32.mrf.mxu0
        %v1727 = vpop.f32.mrf.mxu0
        %v1728 = vadd.f32 0.0, %v1727
        %v1729 = vpop.f32.mrf.mxu0
        %1730 = vmatprep.mubr.bf16.mxu0 0
        %1731 = vmatmul.mubr.bf16.gmra.mxu0 %v1536
        %v1732 = vpop.f32.mrf.mxu0
        %v1733 = vadd.f32 0.0, %v1732
        %v1734 = vpop.f32.mrf.mxu0
        %v1735 = vpop.f32.mrf.mxu0
        %v1736 = vadd.f32 0.0, %v1735
        %v1737 = vpop.f32.mrf.mxu0
        %1738 = vmatprep.mubr.bf16.mxu0 0
        %1739 = vmatmul.mubr.bf16.gmra.mxu0 %v1537
        %v1740 = vpop.f32.mrf.mxu0
        %v1741 = vadd.f32 0.0, %v1740
        %v1742 = vpop.f32.mrf.mxu0
        %v1743 = vpop.f32.mrf.mxu0
        %v1744 = vadd.f32 0.0, %v1743
        %v1745 = vpop.f32.mrf.mxu0
        %1746 = vdwg.mxu0
        %v1747 = vld [vmem:[%s18] sm:$0x1]
        %v1749 = vlaneseq
        %v1750 = vshrl.u32 %v1749, 7
        %v1751 = vsub.s32 0, %v1750
        %v1752 = vrot.slane %v1747, %v1751
        %v1754 = vadd.f32 %v1555, %v1752
        %v1755 = vadd.f32 %v1557, %v1752
        %v1756 = vadd.f32 %v1559, %v1752
        %v1757 = vadd.f32 %v1561, %v1752
        %v1758 = vadd.f32 %v1563, %v1752
        %v1759 = vadd.f32 %v1565, %v1752
        %v1760 = vadd.f32 %v1567, %v1752
        %v1761 = vadd.f32 %v1569, %v1752
        %v1762 = vadd.f32 %v1571, %v1752
        %v1763 = vadd.f32 %v1573, %v1752
        %v1764 = vadd.f32 %v1575, %v1752
        %v1765 = vadd.f32 %v1577, %v1752
        %v1766 = vadd.f32 %v1579, %v1752
        %v1767 = vadd.f32 %v1581, %v1752
        %v1768 = vadd.f32 %v1583, %v1752
        %v1769 = vadd.f32 %v1585, %v1752
        %v1770 = vmul.f32 %v1685, 2.0
        %v1771 = vmul.f32 %v1688, 2.0
        %v1772 = vmul.f32 %v1693, 2.0
        %v1773 = vmul.f32 %v1696, 2.0
        %v1774 = vmul.f32 %v1701, 2.0
        %v1775 = vmul.f32 %v1704, 2.0
        %v1776 = vmul.f32 %v1709, 2.0
        %v1777 = vmul.f32 %v1712, 2.0
        %v1778 = vmul.f32 %v1717, 2.0
        %v1779 = vmul.f32 %v1720, 2.0
        %v1780 = vmul.f32 %v1725, 2.0
        %v1781 = vmul.f32 %v1728, 2.0
        %v1782 = vmul.f32 %v1733, 2.0
        %v1783 = vmul.f32 %v1736, 2.0
        %v1784 = vmul.f32 %v1741, 2.0
        %v1785 = vmul.f32 %v1744, 2.0
        %v1786 = vsub.f32 %v1754, %v1770
        %v1787 = vsub.f32 %v1755, %v1771
        %v1788 = vsub.f32 %v1756, %v1772
        %v1789 = vsub.f32 %v1757, %v1773
        %v1790 = vsub.f32 %v1758, %v1774
        %v1791 = vsub.f32 %v1759, %v1775
        %v1792 = vsub.f32 %v1760, %v1776
        %v1793 = vsub.f32 %v1761, %v1777
        %v1794 = vsub.f32 %v1762, %v1778
        %v1795 = vsub.f32 %v1763, %v1779
        %v1796 = vsub.f32 %v1764, %v1780
        %v1797 = vsub.f32 %v1765, %v1781
        %v1798 = vsub.f32 %v1766, %v1782
        %v1799 = vsub.f32 %v1767, %v1783
        %v1800 = vsub.f32 %v1768, %v1784
        %v1801 = vsub.f32 %v1769, %v1785
        %v1802 = vmax.f32 %v1786, 0.0
        %v1803 = vmax.f32 %v1787, 0.0
        %v1804 = vmax.f32 %v1788, 0.0
        %v1805 = vmax.f32 %v1789, 0.0
        %v1806 = vmax.f32 %v1790, 0.0
        %v1807 = vmax.f32 %v1791, 0.0
        %v1808 = vmax.f32 %v1792, 0.0
        %v1809 = vmax.f32 %v1793, 0.0
        %v1810 = vmax.f32 %v1794, 0.0
        %v1811 = vmax.f32 %v1795, 0.0
        %v1812 = vmax.f32 %v1796, 0.0
        %v1813 = vmax.f32 %v1797, 0.0
        %v1814 = vmax.f32 %v1798, 0.0
        %v1815 = vmax.f32 %v1799, 0.0
        %v1816 = vmax.f32 %v1800, 0.0
        %v1817 = vmax.f32 %v1801, 0.0
        %v1818 = vadd.f32 %v1802, 1.0
        %v1819 = vadd.f32 %v1803, 1.0
        %v1820 = vadd.f32 %v1804, 1.0
        %v1821 = vadd.f32 %v1805, 1.0
        %v1822 = vadd.f32 %v1806, 1.0
        %v1823 = vadd.f32 %v1807, 1.0
        %v1824 = vadd.f32 %v1808, 1.0
        %v1825 = vadd.f32 %v1809, 1.0
        %v1826 = vadd.f32 %v1810, 1.0
        %v1827 = vadd.f32 %v1811, 1.0
        %v1828 = vadd.f32 %v1812, 1.0
        %v1829 = vadd.f32 %v1813, 1.0
        %v1830 = vadd.f32 %v1814, 1.0
        %v1831 = vadd.f32 %v1815, 1.0
        %v1832 = vadd.f32 %v1816, 1.0
        %v1833 = vadd.f32 %v1817, 1.0
        %v1834 = vrcp.pop %v1818
        %v1835 = vrcp.pop %v1819
        %v1836 = vrcp.pop %v1820
        %v1837 = vrcp.pop %v1821
        %v1838 = vrcp.pop %v1822
        %v1839 = vrcp.pop %v1823
        %v1840 = vrcp.pop %v1824
        %v1841 = vrcp.pop %v1825
        %v1842 = vrcp.pop %v1826
        %v1843 = vrcp.pop %v1827
        %v1844 = vrcp.pop %v1828
        %v1845 = vrcp.pop %v1829
        %v1846 = vrcp.pop %v1830
        %v1847 = vrcp.pop %v1831
        %v1848 = vrcp.pop %v1832
        %v1849 = vrcp.pop %v1833
        %1850 = vadd.xlane.f32.xlu0 %v1834
        %v1851 = vpop.xlane.xlu0 %1850
        %1852 = vadd.xlane.f32.xlu0 %v1835
        %v1853 = vpop.xlane.xlu0 %1852
        %1854 = vadd.xlane.f32.xlu0 %v1836
        %v1855 = vpop.xlane.xlu0 %1854
        %1856 = vadd.xlane.f32.xlu0 %v1837
        %v1857 = vpop.xlane.xlu0 %1856
        %1858 = vadd.xlane.f32.xlu0 %v1838
        %v1859 = vpop.xlane.xlu0 %1858
        %1860 = vadd.xlane.f32.xlu0 %v1839
        %v1861 = vpop.xlane.xlu0 %1860
        %1862 = vadd.xlane.f32.xlu0 %v1840
        %v1863 = vpop.xlane.xlu0 %1862
        %1864 = vadd.xlane.f32.xlu0 %v1841
        %v1865 = vpop.xlane.xlu0 %1864
        %1866 = vadd.xlane.f32.xlu0 %v1842
        %v1867 = vpop.xlane.xlu0 %1866
        %1868 = vadd.xlane.f32.xlu0 %v1843
        %v1869 = vpop.xlane.xlu0 %1868
        %1870 = vadd.xlane.f32.xlu0 %v1844
        %v1871 = vpop.xlane.xlu0 %1870
        %1872 = vadd.xlane.f32.xlu0 %v1845
        %v1873 = vpop.xlane.xlu0 %1872
        %1874 = vadd.xlane.f32.xlu0 %v1846
        %v1875 = vpop.xlane.xlu0 %1874
        %1876 = vadd.xlane.f32.xlu0 %v1847
        %v1877 = vpop.xlane.xlu0 %1876
        %1878 = vadd.xlane.f32.xlu0 %v1848
        %v1879 = vpop.xlane.xlu0 %1878
        %1880 = vadd.xlane.f32.xlu0 %v1849
        %v1881 = vpop.xlane.xlu0 %1880
        %v1882 = vrcp.pop %v1851
        %v1883 = vmul.f32 1.0, %v1882
        %v1884 = vrcp.pop %v1853
        %v1885 = vmul.f32 1.0, %v1884
        %v1886 = vrcp.pop %v1855
        %v1887 = vmul.f32 1.0, %v1886
        %v1888 = vrcp.pop %v1857
        %v1889 = vmul.f32 1.0, %v1888
        %v1890 = vrcp.pop %v1859
        %v1891 = vmul.f32 1.0, %v1890
        %v1892 = vrcp.pop %v1861
        %v1893 = vmul.f32 1.0, %v1892
        %v1894 = vrcp.pop %v1863
        %v1895 = vmul.f32 1.0, %v1894
        %v1896 = vrcp.pop %v1865
        %v1897 = vmul.f32 1.0, %v1896
        %v1898 = vrcp.pop %v1867
        %v1899 = vmul.f32 1.0, %v1898
        %v1900 = vrcp.pop %v1869
        %v1901 = vmul.f32 1.0, %v1900
        %v1902 = vrcp.pop %v1871
        %v1903 = vmul.f32 1.0, %v1902
        %v1904 = vrcp.pop %v1873
        %v1905 = vmul.f32 1.0, %v1904
        %v1906 = vrcp.pop %v1875
        %v1907 = vmul.f32 1.0, %v1906
        %v1908 = vrcp.pop %v1877
        %v1909 = vmul.f32 1.0, %v1908
        %v1910 = vrcp.pop %v1879
        %v1911 = vmul.f32 1.0, %v1910
        %v1912 = vrcp.pop %v1881
        %v1913 = vmul.f32 1.0, %v1912
        %v1914 = vmul.f32 %v1834, %v1883
        %v1915 = vmul.f32 %v1835, %v1885
        %v1916 = vmul.f32 %v1836, %v1887
        %v1917 = vmul.f32 %v1837, %v1889
        %v1918 = vmul.f32 %v1838, %v1891
        %v1919 = vmul.f32 %v1839, %v1893
        %v1920 = vmul.f32 %v1840, %v1895
        %v1921 = vmul.f32 %v1841, %v1897
        %v1922 = vmul.f32 %v1842, %v1899
        %v1923 = vmul.f32 %v1843, %v1901
        %v1924 = vmul.f32 %v1844, %v1903
        %v1925 = vmul.f32 %v1845, %v1905
        %v1926 = vmul.f32 %v1846, %v1907
        %v1927 = vmul.f32 %v1847, %v1909
        %v1928 = vmul.f32 %v1848, %v1911
        %v1929 = vmul.f32 %v1849, %v1913
        %1930 = vst [vmem:[%s736] sm:$0xff] %v1914
        %1931 = vst [vmem:[%s736 + $0x8] sm:$0xff] %v1915
        %1932 = vst [vmem:[%s736 + $0x10] sm:$0xff] %v1916
        %1933 = vst [vmem:[%s736 + $0x18] sm:$0xff] %v1917
        %1934 = vst [vmem:[%s736 + $0x20] sm:$0xff] %v1918
        %1935 = vst [vmem:[%s736 + $0x28] sm:$0xff] %v1919
        %1936 = vst [vmem:[%s736 + $0x30] sm:$0xff] %v1920
        %1937 = vst [vmem:[%s736 + $0x38] sm:$0xff] %v1921
        %1938 = vst [vmem:[%s736 + $0x40] sm:$0xff] %v1922
        %1939 = vst [vmem:[%s736 + $0x48] sm:$0xff] %v1923
        %1940 = vst [vmem:[%s736 + $0x50] sm:$0xff] %v1924
        %1941 = vst [vmem:[%s736 + $0x58] sm:$0xff] %v1925
        %1942 = vst [vmem:[%s736 + $0x60] sm:$0xff] %v1926
        %1943 = vst [vmem:[%s736 + $0x68] sm:$0xff] %v1927
        %1944 = vst [vmem:[%s736 + $0x70] sm:$0xff] %v1928
        %1945 = vst [vmem:[%s736 + $0x78] sm:$0xff] %v1929
        %v1946 = vld [vmem:[%s9] sm:$0xf]
        %v1947 = vld [vmem:[%s9 + $0x4] sm:$0xf]
        %v1948 = vld [vmem:[%s9 + $0x8] sm:$0xf]
        %v1949 = vld [vmem:[%s9 + $0xc] sm:$0xf]
        %v1950 = vld [vmem:[%s9 + $0x10] sm:$0xf]
        %v1951 = vld [vmem:[%s9 + $0x14] sm:$0xf]
        %v1952 = vld [vmem:[%s9 + $0x18] sm:$0xf]
        %v1953 = vld [vmem:[%s9 + $0x1c] sm:$0xf]
        %v1954 = vld [vmem:[%s9 + $0x20] sm:$0xf]
        %v1955 = vld [vmem:[%s9 + $0x24] sm:$0xf]
        %v1956 = vld [vmem:[%s9 + $0x28] sm:$0xf]
        %v1957 = vld [vmem:[%s9 + $0x2c] sm:$0xf]
        %v1958 = vld [vmem:[%s9 + $0x30] sm:$0xf]
        %v1959 = vld [vmem:[%s9 + $0x34] sm:$0xf]
        %v1960 = vld [vmem:[%s9 + $0x38] sm:$0xf]
        %v1961 = vld [vmem:[%s9 + $0x3c] sm:$0xf]
        %v1962 = vld [vmem:[%s10] sm:$0x1]
        %v1964 = vlaneseq
        %v1965 = vshrl.u32 %v1964, 7
        %v1966 = vsub.s32 0, %v1965
        %v1967 = vrot.slane %v1962, %v1966
        %v1985 = vunpack.c.l.b16 %v1946
        %v1986 = vunpack.c.l.b16 %v1947
        %v1987 = vunpack.c.l.b16 %v1948
        %v1988 = vunpack.c.l.b16 %v1949
        %v1989 = vunpack.c.l.b16 %v1950
        %v1990 = vunpack.c.l.b16 %v1951
        %v1991 = vunpack.c.l.b16 %v1952
        %v1992 = vunpack.c.l.b16 %v1953
        %v1993 = vunpack.c.l.b16 %v1954
        %v1994 = vunpack.c.l.b16 %v1955
        %v1995 = vunpack.c.l.b16 %v1956
        %v1996 = vunpack.c.l.b16 %v1957
        %v1997 = vunpack.c.l.b16 %v1958
        %v1998 = vunpack.c.l.b16 %v1959
        %v1999 = vunpack.c.l.b16 %v1960
        %v2000 = vunpack.c.l.b16 %v1961
        %v2001 = vpack.c.b16 %v1986, %v1985
        %v2002 = vpack.c.b16 %v1988, %v1987
        %v2003 = vpack.c.b16 %v1990, %v1989
        %v2004 = vpack.c.b16 %v1992, %v1991
        %v2005 = vpack.c.b16 %v1994, %v1993
        %v2006 = vpack.c.b16 %v1996, %v1995
        %v2007 = vpack.c.b16 %v1998, %v1997
        %v2008 = vpack.c.b16 %v2000, %v1999
        %2017 = vmatprep.subr.bf16.mxu0 0
        %2018 = vmatpush1.bf16.msra.mxu0 %v2008
        %2019 = vmatprep.subr.bf16.mxu0 0
        %2020 = vmatpush1.bf16.msra.mxu0 %v2007
        %2021 = vmatprep.subr.bf16.mxu0 0
        %2022 = vmatpush1.bf16.msra.mxu0 %v2006
        %2023 = vmatprep.subr.bf16.mxu0 0
        %2024 = vmatpush1.bf16.msra.mxu0 %v2005
        %2025 = vmatprep.subr.bf16.mxu0 0
        %2026 = vmatpush1.bf16.msra.mxu0 %v2004
        %2027 = vmatprep.subr.bf16.mxu0 0
        %2028 = vmatpush1.bf16.msra.mxu0 %v2003
        %2029 = vmatprep.subr.bf16.mxu0 0
        %2030 = vmatpush1.bf16.msra.mxu0 %v2002
        %2031 = vmatprep.subr.bf16.mxu0 0
        %2032 = vmatpush1.bf16.msra.mxu0 %v2001
        %2033 = vmatprep.subr.bf16.mxu0 0
        %2034 = vmatpush2.bf16.msra.mxu0 0
        %2035 = vmatprep.subr.bf16.mxu0 0
        %2036 = vmatpush2.bf16.msra.mxu0 0
        %2037 = vmatprep.subr.bf16.mxu0 0
        %2038 = vmatpush2.bf16.msra.mxu0 0
        %2039 = vmatprep.subr.bf16.mxu0 0
        %2040 = vmatpush2.bf16.msra.mxu0 0
        %2041 = vmatprep.subr.bf16.mxu0 0
        %2042 = vmatpush2.bf16.msra.mxu0 0
        %2043 = vmatprep.subr.bf16.mxu0 0
        %2044 = vmatpush2.bf16.msra.mxu0 0
        %2045 = vmatprep.subr.bf16.mxu0 0
        %2046 = vmatpush2.bf16.msra.mxu0 0
        %2047 = vmatprep.subr.bf16.mxu0 0
        %2048 = vmatpush2.bf16.msra.mxu0 0
        %2049 = vmatprep.mubr.bf16.mxu0 0
        %2050 = vmatmul.mubr.bf16.gmra.mxu0 %v1530
        %v2051 = vpop.f32.mrf.mxu0
        %v2052 = vadd.f32 %v1967, %v2051
        %v2053 = vpop.f32.mrf.mxu0
        %v2054 = vpop.f32.mrf.mxu0
        %v2055 = vadd.f32 %v1967, %v2054
        %v2056 = vpop.f32.mrf.mxu0
        %2057 = vmatprep.mubr.bf16.mxu0 0
        %2058 = vmatmul.mubr.bf16.gmra.mxu0 %v1531
        %v2059 = vpop.f32.mrf.mxu0
        %v2060 = vadd.f32 %v1967, %v2059
        %v2061 = vpop.f32.mrf.mxu0
        %v2062 = vpop.f32.mrf.mxu0
        %v2063 = vadd.f32 %v1967, %v2062
        %v2064 = vpop.f32.mrf.mxu0
        %2065 = vmatprep.mubr.bf16.mxu0 0
        %2066 = vmatmul.mubr.bf16.gmra.mxu0 %v1532
        %v2067 = vpop.f32.mrf.mxu0
        %v2068 = vadd.f32 %v1967, %v2067
        %v2069 = vpop.f32.mrf.mxu0
        %v2070 = vpop.f32.mrf.mxu0
        %v2071 = vadd.f32 %v1967, %v2070
        %v2072 = vpop.f32.mrf.mxu0
        %2073 = vmatprep.mubr.bf16.mxu0 0
        %2074 = vmatmul.mubr.bf16.gmra.mxu0 %v1533
        %v2075 = vpop.f32.mrf.mxu0
        %v2076 = vadd.f32 %v1967, %v2075
        %v2077 = vpop.f32.mrf.mxu0
        %v2078 = vpop.f32.mrf.mxu0
        %v2079 = vadd.f32 %v1967, %v2078
        %v2080 = vpop.f32.mrf.mxu0
        %2081 = vmatprep.mubr.bf16.mxu0 0
        %2082 = vmatmul.mubr.bf16.gmra.mxu0 %v1534
        %v2083 = vpop.f32.mrf.mxu0
        %v2084 = vadd.f32 %v1967, %v2083
        %v2085 = vpop.f32.mrf.mxu0
        %v2086 = vpop.f32.mrf.mxu0
        %v2087 = vadd.f32 %v1967, %v2086
        %v2088 = vpop.f32.mrf.mxu0
        %2089 = vmatprep.mubr.bf16.mxu0 0
        %2090 = vmatmul.mubr.bf16.gmra.mxu0 %v1535
        %v2091 = vpop.f32.mrf.mxu0
        %v2092 = vadd.f32 %v1967, %v2091
        %v2093 = vpop.f32.mrf.mxu0
        %v2094 = vpop.f32.mrf.mxu0
        %v2095 = vadd.f32 %v1967, %v2094
        %v2096 = vpop.f32.mrf.mxu0
        %2097 = vmatprep.mubr.bf16.mxu0 0
        %2098 = vmatmul.mubr.bf16.gmra.mxu0 %v1536
        %v2099 = vpop.f32.mrf.mxu0
        %v2100 = vadd.f32 %v1967, %v2099
        %v2101 = vpop.f32.mrf.mxu0
        %v2102 = vpop.f32.mrf.mxu0
        %v2103 = vadd.f32 %v1967, %v2102
        %v2104 = vpop.f32.mrf.mxu0
        %2105 = vmatprep.mubr.bf16.mxu0 0
        %2106 = vmatmul.mubr.bf16.gmra.mxu0 %v1537
        %v2107 = vpop.f32.mrf.mxu0
        %v2108 = vadd.f32 %v1967, %v2107
        %v2109 = vpop.f32.mrf.mxu0
        %v2110 = vpop.f32.mrf.mxu0
        %v2111 = vadd.f32 %v1967, %v2110
        %v2112 = vpop.f32.mrf.mxu0
        %2113 = vdwg.mxu0
        %v2114 = vpack.c.bf16 %v2055, %v2052
        %v2115 = vpack.c.bf16 %v2063, %v2060
        %v2116 = vpack.c.bf16 %v2071, %v2068
        %v2117 = vpack.c.bf16 %v2079, %v2076
        %v2118 = vpack.c.bf16 %v2087, %v2084
        %v2119 = vpack.c.bf16 %v2095, %v2092
        %v2120 = vpack.c.bf16 %v2103, %v2100
        %v2121 = vpack.c.bf16 %v2111, %v2108
        %v2122 = vmax.bf16 %v2114, 0
        %v2123 = vmax.bf16 %v2115, 0
        %v2124 = vmax.bf16 %v2116, 0
        %v2125 = vmax.bf16 %v2117, 0
        %v2126 = vmax.bf16 %v2118, 0
        %v2127 = vmax.bf16 %v2119, 0
        %v2128 = vmax.bf16 %v2120, 0
        %v2129 = vmax.bf16 %v2121, 0
        %v2130 = vld [vmem:[%s11] sm:$0xf]
        %v2131 = vld [vmem:[%s11 + $0x4] sm:$0xf]
        %v2132 = vld [vmem:[%s11 + $0x8] sm:$0xf]
        %v2133 = vld [vmem:[%s11 + $0xc] sm:$0xf]
        %v2134 = vld [vmem:[%s11 + $0x10] sm:$0xf]
        %v2135 = vld [vmem:[%s11 + $0x14] sm:$0xf]
        %v2136 = vld [vmem:[%s11 + $0x18] sm:$0xf]
        %v2137 = vld [vmem:[%s11 + $0x1c] sm:$0xf]
        %v2138 = vld [vmem:[%s11 + $0x20] sm:$0xf]
        %v2139 = vld [vmem:[%s11 + $0x24] sm:$0xf]
        %v2140 = vld [vmem:[%s11 + $0x28] sm:$0xf]
        %v2141 = vld [vmem:[%s11 + $0x2c] sm:$0xf]
        %v2142 = vld [vmem:[%s11 + $0x30] sm:$0xf]
        %v2143 = vld [vmem:[%s11 + $0x34] sm:$0xf]
        %v2144 = vld [vmem:[%s11 + $0x38] sm:$0xf]
        %v2145 = vld [vmem:[%s11 + $0x3c] sm:$0xf]
        %v2146 = vld [vmem:[%s12] sm:$0x1]
        %v2148 = vlaneseq
        %v2149 = vshrl.u32 %v2148, 7
        %v2150 = vsub.s32 0, %v2149
        %v2151 = vrot.slane %v2146, %v2150
        %v2169 = vunpack.c.l.b16 %v2130
        %v2170 = vunpack.c.l.b16 %v2131
        %v2171 = vunpack.c.l.b16 %v2132
        %v2172 = vunpack.c.l.b16 %v2133
        %v2173 = vunpack.c.l.b16 %v2134
        %v2174 = vunpack.c.l.b16 %v2135
        %v2175 = vunpack.c.l.b16 %v2136
        %v2176 = vunpack.c.l.b16 %v2137
        %v2177 = vunpack.c.l.b16 %v2138
        %v2178 = vunpack.c.l.b16 %v2139
        %v2179 = vunpack.c.l.b16 %v2140
        %v2180 = vunpack.c.l.b16 %v2141
        %v2181 = vunpack.c.l.b16 %v2142
        %v2182 = vunpack.c.l.b16 %v2143
        %v2183 = vunpack.c.l.b16 %v2144
        %v2184 = vunpack.c.l.b16 %v2145
        %v2185 = vpack.c.b16 %v2170, %v2169
        %v2186 = vpack.c.b16 %v2172, %v2171
        %v2187 = vpack.c.b16 %v2174, %v2173
        %v2188 = vpack.c.b16 %v2176, %v2175
        %v2189 = vpack.c.b16 %v2178, %v2177
        %v2190 = vpack.c.b16 %v2180, %v2179
        %v2191 = vpack.c.b16 %v2182, %v2181
        %v2192 = vpack.c.b16 %v2184, %v2183
        %2201 = vmatprep.subr.bf16.mxu0 0
        %2202 = vmatpush1.bf16.msra.mxu0 %v2192
        %2203 = vmatprep.subr.bf16.mxu0 0
        %2204 = vmatpush1.bf16.msra.mxu0 %v2191
        %2205 = vmatprep.subr.bf16.mxu0 0
        %2206 = vmatpush1.bf16.msra.mxu0 %v2190
        %2207 = vmatprep.subr.bf16.mxu0 0
        %2208 = vmatpush1.bf16.msra.mxu0 %v2189
        %2209 = vmatprep.subr.bf16.mxu0 0
        %2210 = vmatpush1.bf16.msra.mxu0 %v2188
        %2211 = vmatprep.subr.bf16.mxu0 0
        %2212 = vmatpush1.bf16.msra.mxu0 %v2187
        %2213 = vmatprep.subr.bf16.mxu0 0
        %2214 = vmatpush1.bf16.msra.mxu0 %v2186
        %2215 = vmatprep.subr.bf16.mxu0 0
        %2216 = vmatpush1.bf16.msra.mxu0 %v2185
        %2217 = vmatprep.subr.bf16.mxu0 0
        %2218 = vmatpush2.bf16.msra.mxu0 0
        %2219 = vmatprep.subr.bf16.mxu0 0
        %2220 = vmatpush2.bf16.msra.mxu0 0
        %2221 = vmatprep.subr.bf16.mxu0 0
        %2222 = vmatpush2.bf16.msra.mxu0 0
        %2223 = vmatprep.subr.bf16.mxu0 0
        %2224 = vmatpush2.bf16.msra.mxu0 0
        %2225 = vmatprep.subr.bf16.mxu0 0
        %2226 = vmatpush2.bf16.msra.mxu0 0
        %2227 = vmatprep.subr.bf16.mxu0 0
        %2228 = vmatpush2.bf16.msra.mxu0 0
        %2229 = vmatprep.subr.bf16.mxu0 0
        %2230 = vmatpush2.bf16.msra.mxu0 0
        %2231 = vmatprep.subr.bf16.mxu0 0
        %2232 = vmatpush2.bf16.msra.mxu0 0
        %2233 = vmatprep.mubr.bf16.mxu0 0
        %2234 = vmatmul.mubr.bf16.gmra.mxu0 %v2122
        %v2235 = vpop.f32.mrf.mxu0
        %v2236 = vadd.f32 %v2151, %v2235
        %v2237 = vpop.f32.mrf.mxu0
        %v2238 = vpop.f32.mrf.mxu0
        %v2239 = vadd.f32 %v2151, %v2238
        %v2240 = vpop.f32.mrf.mxu0
        %2241 = vmatprep.mubr.bf16.mxu0 0
        %2242 = vmatmul.mubr.bf16.gmra.mxu0 %v2123
        %v2243 = vpop.f32.mrf.mxu0
        %v2244 = vadd.f32 %v2151, %v2243
        %v2245 = vpop.f32.mrf.mxu0
        %v2246 = vpop.f32.mrf.mxu0
        %v2247 = vadd.f32 %v2151, %v2246
        %v2248 = vpop.f32.mrf.mxu0
        %2249 = vmatprep.mubr.bf16.mxu0 0
        %2250 = vmatmul.mubr.bf16.gmra.mxu0 %v2124
        %v2251 = vpop.f32.mrf.mxu0
        %v2252 = vadd.f32 %v2151, %v2251
        %v2253 = vpop.f32.mrf.mxu0
        %v2254 = vpop.f32.mrf.mxu0
        %v2255 = vadd.f32 %v2151, %v2254
        %v2256 = vpop.f32.mrf.mxu0
        %2257 = vmatprep.mubr.bf16.mxu0 0
        %2258 = vmatmul.mubr.bf16.gmra.mxu0 %v2125
        %v2259 = vpop.f32.mrf.mxu0
        %v2260 = vadd.f32 %v2151, %v2259
        %v2261 = vpop.f32.mrf.mxu0
        %v2262 = vpop.f32.mrf.mxu0
        %v2263 = vadd.f32 %v2151, %v2262
        %v2264 = vpop.f32.mrf.mxu0
        %2265 = vmatprep.mubr.bf16.mxu0 0
        %2266 = vmatmul.mubr.bf16.gmra.mxu0 %v2126
        %v2267 = vpop.f32.mrf.mxu0
        %v2268 = vadd.f32 %v2151, %v2267
        %v2269 = vpop.f32.mrf.mxu0
        %v2270 = vpop.f32.mrf.mxu0
        %v2271 = vadd.f32 %v2151, %v2270
        %v2272 = vpop.f32.mrf.mxu0
        %2273 = vmatprep.mubr.bf16.mxu0 0
        %2274 = vmatmul.mubr.bf16.gmra.mxu0 %v2127
        %v2275 = vpop.f32.mrf.mxu0
        %v2276 = vadd.f32 %v2151, %v2275
        %v2277 = vpop.f32.mrf.mxu0
        %v2278 = vpop.f32.mrf.mxu0
        %v2279 = vadd.f32 %v2151, %v2278
        %v2280 = vpop.f32.mrf.mxu0
        %2281 = vmatprep.mubr.bf16.mxu0 0
        %2282 = vmatmul.mubr.bf16.gmra.mxu0 %v2128
        %v2283 = vpop.f32.mrf.mxu0
        %v2284 = vadd.f32 %v2151, %v2283
        %v2285 = vpop.f32.mrf.mxu0
        %v2286 = vpop.f32.mrf.mxu0
        %v2287 = vadd.f32 %v2151, %v2286
        %v2288 = vpop.f32.mrf.mxu0
        %2289 = vmatprep.mubr.bf16.mxu0 0
        %2290 = vmatmul.mubr.bf16.gmra.mxu0 %v2129
        %v2291 = vpop.f32.mrf.mxu0
        %v2292 = vadd.f32 %v2151, %v2291
        %v2293 = vpop.f32.mrf.mxu0
        %v2294 = vpop.f32.mrf.mxu0
        %v2295 = vadd.f32 %v2151, %v2294
        %v2296 = vpop.f32.mrf.mxu0
        %2297 = vdwg.mxu0
        %v2298 = vpack.c.bf16 %v2239, %v2236
        %v2299 = vpack.c.bf16 %v2247, %v2244
        %v2300 = vpack.c.bf16 %v2255, %v2252
        %v2301 = vpack.c.bf16 %v2263, %v2260
        %v2302 = vpack.c.bf16 %v2271, %v2268
        %v2303 = vpack.c.bf16 %v2279, %v2276
        %v2304 = vpack.c.bf16 %v2287, %v2284
        %v2305 = vpack.c.bf16 %v2295, %v2292
        %v2306 = vmax.bf16 %v2298, 0
        %v2307 = vmax.bf16 %v2299, 0
        %v2308 = vmax.bf16 %v2300, 0
        %v2309 = vmax.bf16 %v2301, 0
        %v2310 = vmax.bf16 %v2302, 0
        %v2311 = vmax.bf16 %v2303, 0
        %v2312 = vmax.bf16 %v2304, 0
        %v2313 = vmax.bf16 %v2305, 0
        %v2314 = vld [vmem:[%s13] sm:$0xf]
        %v2315 = vld [vmem:[%s13 + $0x4] sm:$0xf]
        %v2316 = vld [vmem:[%s13 + $0x8] sm:$0xf]
        %v2317 = vld [vmem:[%s13 + $0xc] sm:$0xf]
        %v2318 = vld [vmem:[%s13 + $0x10] sm:$0xf]
        %v2319 = vld [vmem:[%s13 + $0x14] sm:$0xf]
        %v2320 = vld [vmem:[%s13 + $0x18] sm:$0xf]
        %v2321 = vld [vmem:[%s13 + $0x1c] sm:$0xf]
        %v2322 = vld [vmem:[%s13 + $0x20] sm:$0xf]
        %v2323 = vld [vmem:[%s13 + $0x24] sm:$0xf]
        %v2324 = vld [vmem:[%s13 + $0x28] sm:$0xf]
        %v2325 = vld [vmem:[%s13 + $0x2c] sm:$0xf]
        %v2326 = vld [vmem:[%s13 + $0x30] sm:$0xf]
        %v2327 = vld [vmem:[%s13 + $0x34] sm:$0xf]
        %v2328 = vld [vmem:[%s13 + $0x38] sm:$0xf]
        %v2329 = vld [vmem:[%s13 + $0x3c] sm:$0xf]
        %v2330 = vld [vmem:[%s14] sm:$0x1]
        %v2332 = vlaneseq
        %v2333 = vshrl.u32 %v2332, 7
        %v2334 = vsub.s32 0, %v2333
        %v2335 = vrot.slane %v2330, %v2334
        %v2353 = vunpack.c.l.b16 %v2314
        %v2354 = vunpack.c.l.b16 %v2315
        %v2355 = vunpack.c.l.b16 %v2316
        %v2356 = vunpack.c.l.b16 %v2317
        %v2357 = vunpack.c.l.b16 %v2318
        %v2358 = vunpack.c.l.b16 %v2319
        %v2359 = vunpack.c.l.b16 %v2320
        %v2360 = vunpack.c.l.b16 %v2321
        %v2361 = vunpack.c.l.b16 %v2322
        %v2362 = vunpack.c.l.b16 %v2323
        %v2363 = vunpack.c.l.b16 %v2324
        %v2364 = vunpack.c.l.b16 %v2325
        %v2365 = vunpack.c.l.b16 %v2326
        %v2366 = vunpack.c.l.b16 %v2327
        %v2367 = vunpack.c.l.b16 %v2328
        %v2368 = vunpack.c.l.b16 %v2329
        %v2369 = vpack.c.b16 %v2354, %v2353
        %v2370 = vpack.c.b16 %v2356, %v2355
        %v2371 = vpack.c.b16 %v2358, %v2357
        %v2372 = vpack.c.b16 %v2360, %v2359
        %v2373 = vpack.c.b16 %v2362, %v2361
        %v2374 = vpack.c.b16 %v2364, %v2363
        %v2375 = vpack.c.b16 %v2366, %v2365
        %v2376 = vpack.c.b16 %v2368, %v2367
        %2385 = vmatprep.subr.bf16.mxu0 0
        %2386 = vmatpush1.bf16.msra.mxu0 %v2376
        %2387 = vmatprep.subr.bf16.mxu0 0
        %2388 = vmatpush1.bf16.msra.mxu0 %v2375
        %2389 = vmatprep.subr.bf16.mxu0 0
        %2390 = vmatpush1.bf16.msra.mxu0 %v2374
        %2391 = vmatprep.subr.bf16.mxu0 0
        %2392 = vmatpush1.bf16.msra.mxu0 %v2373
        %2393 = vmatprep.subr.bf16.mxu0 0
        %2394 = vmatpush1.bf16.msra.mxu0 %v2372
        %2395 = vmatprep.subr.bf16.mxu0 0
        %2396 = vmatpush1.bf16.msra.mxu0 %v2371
        %2397 = vmatprep.subr.bf16.mxu0 0
        %2398 = vmatpush1.bf16.msra.mxu0 %v2370
        %2399 = vmatprep.subr.bf16.mxu0 0
        %2400 = vmatpush1.bf16.msra.mxu0 %v2369
        %2401 = vmatprep.subr.bf16.mxu0 0
        %2402 = vmatpush2.bf16.msra.mxu0 0
        %2403 = vmatprep.subr.bf16.mxu0 0
        %2404 = vmatpush2.bf16.msra.mxu0 0
        %2405 = vmatprep.subr.bf16.mxu0 0
        %2406 = vmatpush2.bf16.msra.mxu0 0
        %2407 = vmatprep.subr.bf16.mxu0 0
        %2408 = vmatpush2.bf16.msra.mxu0 0
        %2409 = vmatprep.subr.bf16.mxu0 0
        %2410 = vmatpush2.bf16.msra.mxu0 0
        %2411 = vmatprep.subr.bf16.mxu0 0
        %2412 = vmatpush2.bf16.msra.mxu0 0
        %2413 = vmatprep.subr.bf16.mxu0 0
        %2414 = vmatpush2.bf16.msra.mxu0 0
        %2415 = vmatprep.subr.bf16.mxu0 0
        %2416 = vmatpush2.bf16.msra.mxu0 0
        %2417 = vmatprep.mubr.bf16.mxu0 0
        %2418 = vmatmul.mubr.bf16.gmra.mxu0 %v2306
        %v2419 = vpop.f32.mrf.mxu0
        %v2420 = vadd.f32 %v2335, %v2419
        %v2421 = vpop.f32.mrf.mxu0
        %v2422 = vpop.f32.mrf.mxu0
        %v2423 = vadd.f32 %v2335, %v2422
        %v2424 = vpop.f32.mrf.mxu0
        %2425 = vmatprep.mubr.bf16.mxu0 0
        %2426 = vmatmul.mubr.bf16.gmra.mxu0 %v2307
        %v2427 = vpop.f32.mrf.mxu0
        %v2428 = vadd.f32 %v2335, %v2427
        %v2429 = vpop.f32.mrf.mxu0
        %v2430 = vpop.f32.mrf.mxu0
        %v2431 = vadd.f32 %v2335, %v2430
        %v2432 = vpop.f32.mrf.mxu0
        %2433 = vmatprep.mubr.bf16.mxu0 0
        %2434 = vmatmul.mubr.bf16.gmra.mxu0 %v2308
        %v2435 = vpop.f32.mrf.mxu0
        %v2436 = vadd.f32 %v2335, %v2435
        %v2437 = vpop.f32.mrf.mxu0
        %v2438 = vpop.f32.mrf.mxu0
        %v2439 = vadd.f32 %v2335, %v2438
        %v2440 = vpop.f32.mrf.mxu0
        %2441 = vmatprep.mubr.bf16.mxu0 0
        %2442 = vmatmul.mubr.bf16.gmra.mxu0 %v2309
        %v2443 = vpop.f32.mrf.mxu0
        %v2444 = vadd.f32 %v2335, %v2443
        %v2445 = vpop.f32.mrf.mxu0
        %v2446 = vpop.f32.mrf.mxu0
        %v2447 = vadd.f32 %v2335, %v2446
        %v2448 = vpop.f32.mrf.mxu0
        %2449 = vmatprep.mubr.bf16.mxu0 0
        %2450 = vmatmul.mubr.bf16.gmra.mxu0 %v2310
        %v2451 = vpop.f32.mrf.mxu0
        %v2452 = vadd.f32 %v2335, %v2451
        %v2453 = vpop.f32.mrf.mxu0
        %v2454 = vpop.f32.mrf.mxu0
        %v2455 = vadd.f32 %v2335, %v2454
        %v2456 = vpop.f32.mrf.mxu0
        %2457 = vmatprep.mubr.bf16.mxu0 0
        %2458 = vmatmul.mubr.bf16.gmra.mxu0 %v2311
        %v2459 = vpop.f32.mrf.mxu0
        %v2460 = vadd.f32 %v2335, %v2459
        %v2461 = vpop.f32.mrf.mxu0
        %v2462 = vpop.f32.mrf.mxu0
        %v2463 = vadd.f32 %v2335, %v2462
        %v2464 = vpop.f32.mrf.mxu0
        %2465 = vmatprep.mubr.bf16.mxu0 0
        %2466 = vmatmul.mubr.bf16.gmra.mxu0 %v2312
        %v2467 = vpop.f32.mrf.mxu0
        %v2468 = vadd.f32 %v2335, %v2467
        %v2469 = vpop.f32.mrf.mxu0
        %v2470 = vpop.f32.mrf.mxu0
        %v2471 = vadd.f32 %v2335, %v2470
        %v2472 = vpop.f32.mrf.mxu0
        %2473 = vmatprep.mubr.bf16.mxu0 0
        %2474 = vmatmul.mubr.bf16.gmra.mxu0 %v2313
        %v2475 = vpop.f32.mrf.mxu0
        %v2476 = vadd.f32 %v2335, %v2475
        %v2477 = vpop.f32.mrf.mxu0
        %v2478 = vpop.f32.mrf.mxu0
        %v2479 = vadd.f32 %v2335, %v2478
        %v2480 = vpop.f32.mrf.mxu0
        %2481 = vdwg.mxu0
        %v2482 = vpack.c.bf16 %v2423, %v2420
        %v2483 = vpack.c.bf16 %v2431, %v2428
        %v2484 = vpack.c.bf16 %v2439, %v2436
        %v2485 = vpack.c.bf16 %v2447, %v2444
        %v2486 = vpack.c.bf16 %v2455, %v2452
        %v2487 = vpack.c.bf16 %v2463, %v2460
        %v2488 = vpack.c.bf16 %v2471, %v2468
        %v2489 = vpack.c.bf16 %v2479, %v2476
        %v2490 = vmax.bf16 %v2482, 0
        %v2491 = vmax.bf16 %v2483, 0
        %v2492 = vmax.bf16 %v2484, 0
        %v2493 = vmax.bf16 %v2485, 0
        %v2494 = vmax.bf16 %v2486, 0
        %v2495 = vmax.bf16 %v2487, 0
        %v2496 = vmax.bf16 %v2488, 0
        %v2497 = vmax.bf16 %v2489, 0
        %v2498 = vld [vmem:[#allocation6] sm:$0xf]
        %v2499 = vld [vmem:[#allocation6 + $0x4] sm:$0xf]
        %v2500 = vld [vmem:[#allocation6 + $0x8] sm:$0xf]
        %v2501 = vld [vmem:[#allocation6 + $0xc] sm:$0xf]
        %v2502 = vld [vmem:[#allocation6 + $0x10] sm:$0xf]
        %v2503 = vld [vmem:[#allocation6 + $0x14] sm:$0xf]
        %v2504 = vld [vmem:[#allocation6 + $0x18] sm:$0xf]
        %v2505 = vld [vmem:[#allocation6 + $0x1c] sm:$0xf]
        %v2506 = vld [vmem:[#allocation6 + $0x20] sm:$0xf]
        %v2507 = vld [vmem:[#allocation6 + $0x24] sm:$0xf]
        %v2508 = vld [vmem:[#allocation6 + $0x28] sm:$0xf]
        %v2509 = vld [vmem:[#allocation6 + $0x2c] sm:$0xf]
        %v2510 = vld [vmem:[#allocation6 + $0x30] sm:$0xf]
        %v2511 = vld [vmem:[#allocation6 + $0x34] sm:$0xf]
        %v2512 = vld [vmem:[#allocation6 + $0x38] sm:$0xf]
        %v2513 = vld [vmem:[#allocation6 + $0x3c] sm:$0xf]
        %v2514 = vld [vmem:[%s16] sm:$0x1]
        %v2516 = vlaneseq
        %v2517 = vshrl.u32 %v2516, 7
        %v2518 = vsub.s32 0, %v2517
        %v2519 = vrot.slane %v2514, %v2518
        %v2537 = vunpack.c.l.b16 %v2498
        %v2538 = vunpack.c.l.b16 %v2499
        %v2539 = vunpack.c.l.b16 %v2500
        %v2540 = vunpack.c.l.b16 %v2501
        %v2541 = vunpack.c.l.b16 %v2502
        %v2542 = vunpack.c.l.b16 %v2503
        %v2543 = vunpack.c.l.b16 %v2504
        %v2544 = vunpack.c.l.b16 %v2505
        %v2545 = vunpack.c.l.b16 %v2506
        %v2546 = vunpack.c.l.b16 %v2507
        %v2547 = vunpack.c.l.b16 %v2508
        %v2548 = vunpack.c.l.b16 %v2509
        %v2549 = vunpack.c.l.b16 %v2510
        %v2550 = vunpack.c.l.b16 %v2511
        %v2551 = vunpack.c.l.b16 %v2512
        %v2552 = vunpack.c.l.b16 %v2513
        %v2553 = vpack.c.b16 %v2538, %v2537
        %v2554 = vpack.c.b16 %v2540, %v2539
        %v2555 = vpack.c.b16 %v2542, %v2541
        %v2556 = vpack.c.b16 %v2544, %v2543
        %v2557 = vpack.c.b16 %v2546, %v2545
        %v2558 = vpack.c.b16 %v2548, %v2547
        %v2559 = vpack.c.b16 %v2550, %v2549
        %v2560 = vpack.c.b16 %v2552, %v2551
        %2569 = vmatprep.subr.bf16.mxu0 0
        %2570 = vmatpush1.bf16.msra.mxu0 %v2560
        %2571 = vmatprep.subr.bf16.mxu0 0
        %2572 = vmatpush1.bf16.msra.mxu0 %v2559
        %2573 = vmatprep.subr.bf16.mxu0 0
        %2574 = vmatpush1.bf16.msra.mxu0 %v2558
        %2575 = vmatprep.subr.bf16.mxu0 0
        %2576 = vmatpush1.bf16.msra.mxu0 %v2557
        %2577 = vmatprep.subr.bf16.mxu0 0
        %2578 = vmatpush1.bf16.msra.mxu0 %v2556
        %2579 = vmatprep.subr.bf16.mxu0 0
        %2580 = vmatpush1.bf16.msra.mxu0 %v2555
        %2581 = vmatprep.subr.bf16.mxu0 0
        %2582 = vmatpush1.bf16.msra.mxu0 %v2554
        %2583 = vmatprep.subr.bf16.mxu0 0
        %2584 = vmatpush1.bf16.msra.mxu0 %v2553
        %2585 = vmatprep.subr.bf16.mxu0 0
        %2586 = vmatpush2.bf16.msra.mxu0 0
        %2587 = vmatprep.subr.bf16.mxu0 0
        %2588 = vmatpush2.bf16.msra.mxu0 0
        %2589 = vmatprep.subr.bf16.mxu0 0
        %2590 = vmatpush2.bf16.msra.mxu0 0
        %2591 = vmatprep.subr.bf16.mxu0 0
        %2592 = vmatpush2.bf16.msra.mxu0 0
        %2593 = vmatprep.subr.bf16.mxu0 0
        %2594 = vmatpush2.bf16.msra.mxu0 0
        %2595 = vmatprep.subr.bf16.mxu0 0
        %2596 = vmatpush2.bf16.msra.mxu0 0
        %2597 = vmatprep.subr.bf16.mxu0 0
        %2598 = vmatpush2.bf16.msra.mxu0 0
        %2599 = vmatprep.subr.bf16.mxu0 0
        %2600 = vmatpush2.bf16.msra.mxu0 0
        %2601 = vmatprep.mubr.bf16.mxu0 0
        %2602 = vmatmul.mubr.bf16.gmra.mxu0 %v2490
        %v2603 = vpop.f32.mrf.mxu0
        %v2604 = vadd.f32 %v2519, %v2603
        %v2605 = vpop.f32.mrf.mxu0
        %v2606 = vpop.f32.mrf.mxu0
        %v2607 = vadd.f32 %v2519, %v2606
        %v2608 = vpop.f32.mrf.mxu0
        %2609 = vmatprep.mubr.bf16.mxu0 0
        %2610 = vmatmul.mubr.bf16.gmra.mxu0 %v2491
        %v2611 = vpop.f32.mrf.mxu0
        %v2612 = vadd.f32 %v2519, %v2611
        %v2613 = vpop.f32.mrf.mxu0
        %v2614 = vpop.f32.mrf.mxu0
        %v2615 = vadd.f32 %v2519, %v2614
        %v2616 = vpop.f32.mrf.mxu0
        %2617 = vmatprep.mubr.bf16.mxu0 0
        %2618 = vmatmul.mubr.bf16.gmra.mxu0 %v2492
        %v2619 = vpop.f32.mrf.mxu0
        %v2620 = vadd.f32 %v2519, %v2619
        %v2621 = vpop.f32.mrf.mxu0
        %v2622 = vpop.f32.mrf.mxu0
        %v2623 = vadd.f32 %v2519, %v2622
        %v2624 = vpop.f32.mrf.mxu0
        %2625 = vmatprep.mubr.bf16.mxu0 0
        %2626 = vmatmul.mubr.bf16.gmra.mxu0 %v2493
        %v2627 = vpop.f32.mrf.mxu0
        %v2628 = vadd.f32 %v2519, %v2627
        %v2629 = vpop.f32.mrf.mxu0
        %v2630 = vpop.f32.mrf.mxu0
        %v2631 = vadd.f32 %v2519, %v2630
        %v2632 = vpop.f32.mrf.mxu0
        %2633 = vmatprep.mubr.bf16.mxu0 0
        %2634 = vmatmul.mubr.bf16.gmra.mxu0 %v2494
        %v2635 = vpop.f32.mrf.mxu0
        %v2636 = vadd.f32 %v2519, %v2635
        %v2637 = vpop.f32.mrf.mxu0
        %v2638 = vpop.f32.mrf.mxu0
        %v2639 = vadd.f32 %v2519, %v2638
        %v2640 = vpop.f32.mrf.mxu0
        %2641 = vmatprep.mubr.bf16.mxu0 0
        %2642 = vmatmul.mubr.bf16.gmra.mxu0 %v2495
        %v2643 = vpop.f32.mrf.mxu0
        %v2644 = vadd.f32 %v2519, %v2643
        %v2645 = vpop.f32.mrf.mxu0
        %v2646 = vpop.f32.mrf.mxu0
        %v2647 = vadd.f32 %v2519, %v2646
        %v2648 = vpop.f32.mrf.mxu0
        %2649 = vmatprep.mubr.bf16.mxu0 0
        %2650 = vmatmul.mubr.bf16.gmra.mxu0 %v2496
        %v2651 = vpop.f32.mrf.mxu0
        %v2652 = vadd.f32 %v2519, %v2651
        %v2653 = vpop.f32.mrf.mxu0
        %v2654 = vpop.f32.mrf.mxu0
        %v2655 = vadd.f32 %v2519, %v2654
        %v2656 = vpop.f32.mrf.mxu0
        %2657 = vmatprep.mubr.bf16.mxu0 0
        %2658 = vmatmul.mubr.bf16.gmra.mxu0 %v2497
        %v2659 = vpop.f32.mrf.mxu0
        %v2660 = vadd.f32 %v2519, %v2659
        %v2661 = vpop.f32.mrf.mxu0
        %v2662 = vpop.f32.mrf.mxu0
        %v2663 = vadd.f32 %v2519, %v2662
        %v2664 = vpop.f32.mrf.mxu0
        %2665 = vdwg.mxu0
        %v2666 = vpack.c.bf16 %v2607, %v2604
        %v2667 = vpack.c.bf16 %v2615, %v2612
        %v2668 = vpack.c.bf16 %v2623, %v2620
        %v2669 = vpack.c.bf16 %v2631, %v2628
        %v2670 = vpack.c.bf16 %v2639, %v2636
        %v2671 = vpack.c.bf16 %v2647, %v2644
        %v2672 = vpack.c.bf16 %v2655, %v2652
        %v2673 = vpack.c.bf16 %v2663, %v2660
        %v2682 = vunpack.c.l.b16 %v2666
        %v2683 = vunpack.c.h.b16 %v2666
        %v2684 = vunpack.c.l.b16 %v2667
        %v2685 = vunpack.c.h.b16 %v2667
        %v2686 = vunpack.c.l.b16 %v2668
        %v2687 = vunpack.c.h.b16 %v2668
        %v2688 = vunpack.c.l.b16 %v2669
        %v2689 = vunpack.c.h.b16 %v2669
        %v2690 = vunpack.c.l.b16 %v2670
        %v2691 = vunpack.c.h.b16 %v2670
        %v2692 = vunpack.c.l.b16 %v2671
        %v2693 = vunpack.c.h.b16 %v2671
        %v2694 = vunpack.c.l.b16 %v2672
        %v2695 = vunpack.c.h.b16 %v2672
        %v2696 = vunpack.c.l.b16 %v2673
        %v2697 = vunpack.c.h.b16 %v2673
        %v2698 = vpack.c.b16 %v2682, %v2682
        %v2699 = vpack.c.b16 %v2683, %v2683
        %v2700 = vpack.c.b16 %v2684, %v2684
        %v2701 = vpack.c.b16 %v2685, %v2685
        %v2702 = vpack.c.b16 %v2686, %v2686
        %v2703 = vpack.c.b16 %v2687, %v2687
        %v2704 = vpack.c.b16 %v2688, %v2688
        %v2705 = vpack.c.b16 %v2689, %v2689
        %v2706 = vpack.c.b16 %v2690, %v2690
        %v2707 = vpack.c.b16 %v2691, %v2691
        %v2708 = vpack.c.b16 %v2692, %v2692
        %v2709 = vpack.c.b16 %v2693, %v2693
        %v2710 = vpack.c.b16 %v2694, %v2694
        %v2711 = vpack.c.b16 %v2695, %v2695
        %v2712 = vpack.c.b16 %v2696, %v2696
        %v2713 = vpack.c.b16 %v2697, %v2697
        %2730 = vst [vmem:[%s730] sm:$0xf] %v2698
        %2731 = vst [vmem:[%s730 + $0x4] sm:$0xf] %v2699
        %2732 = vst [vmem:[%s730 + $0x8] sm:$0xf] %v2700
        %2733 = vst [vmem:[%s730 + $0xc] sm:$0xf] %v2701
        %2734 = vst [vmem:[%s730 + $0x10] sm:$0xf] %v2702
        %2735 = vst [vmem:[%s730 + $0x14] sm:$0xf] %v2703
        %2736 = vst [vmem:[%s730 + $0x18] sm:$0xf] %v2704
        %2737 = vst [vmem:[%s730 + $0x1c] sm:$0xf] %v2705
        %2738 = vst [vmem:[%s730 + $0x20] sm:$0xf] %v2706
        %2739 = vst [vmem:[%s730 + $0x24] sm:$0xf] %v2707
        %2740 = vst [vmem:[%s730 + $0x28] sm:$0xf] %v2708
        %2741 = vst [vmem:[%s730 + $0x2c] sm:$0xf] %v2709
        %2742 = vst [vmem:[%s730 + $0x30] sm:$0xf] %v2710
        %2743 = vst [vmem:[%s730 + $0x34] sm:$0xf] %v2711
        %2744 = vst [vmem:[%s730 + $0x38] sm:$0xf] %v2712
        %2745 = vst [vmem:[%s730 + $0x3c] sm:$0xf] %v2713
        %s2746 = smul.u32 16, %s36
        %p2747 = scmp.lt.s32.totalorder %s2746, 31
        %s2748 = scalar_select %p2747, %s2746, 31
        %s2749 = smul.addr %s2748, 4
        %s2750 = scalar_lea.vmem %s19, %s2749
        %s2751 = smul.u32 16, %s36
        %p2752 = scmp.lt.s32.totalorder %s2751, 31
        %s2753 = scalar_select %p2752, %s2751, 31
        %s2754 = smul.addr %s2753, 8
        %s2755 = scalar_lea.vmem %s20, %s2754
        %s2756 = smul.u32 16, %s36
        %p2757 = scmp.lt.s32.totalorder %s2756, 31
        %s2758 = scalar_select %p2757, %s2756, 31
        %s2759 = smul.addr %s2758, 8
        %s2760 = scalar_lea.vmem %s21, %s2759
        // Predicated region
        $region113: #{idec_forward.1} parent=95 // pred_check
          %p2761 = pneg %p458
        $region114: #{idec_forward.1} parent=95 // pred_check_branch
          %2763 = sbr.rel (%p2761) target = $region116
        $region115: #{idec_forward.1} parent=95 // pred_region
          %s2764 = smul.u32 16, %s36
        $region116: #{idec_forward.1} parent=95 // pred_fallthru
          _
        // Predicated region
        $region117: #{idec_forward.1} parent=95 // pred_check
          %p2765 = pneg %p484
        $region118: #{idec_forward.1} parent=95 // pred_check_branch
          %2767 = sbr.rel (%p2765) target = $region120
        $region119: #{idec_forward.1} parent=95 // pred_region
          %s2768 = smul.u32 16, %s36
        $region120: #{idec_forward.1} parent=95 // pred_fallthru
          _
        // Predicated region
        $region121: #{idec_forward.1} parent=95 // pred_check
          %p2769 = pneg %p510
        $region122: #{idec_forward.1} parent=95 // pred_check_branch
          %2771 = sbr.rel (%p2769) target = $region124
        $region123: #{idec_forward.1} parent=95 // pred_region
          %s2772 = smul.u32 16, %s36
        $region124: #{idec_forward.1} parent=95 // pred_fallthru
          _
      $region96: #{idec_forward.1} parent=5 // pred_fallthru
        _
      %p2773 = scmp.le.s32.totalorder 2, %s31
      // Predicated region
      $region125: #{idec_forward.1} parent=5 // pred_check
        %p2774 = pneg %p2773
      $region126: #{idec_forward.1} parent=5 // pred_check_branch
        %2776 = sbr.rel (%p2774) target = $region128
      $region127: #{idec_forward.1} parent=5 // pred_region
        %s2777 = ssub.s32 %s31, 2
        // Predicated region
        $region129: #{idec_forward.1} parent=127 // pred_check
          %p2778 = pneg %p464
        $region130: #{idec_forward.1} parent=127 // pred_check_branch
          %2780 = sbr.rel (%p2778) target = $region132
        $region131: #{idec_forward.1} parent=127 // pred_region
          %s2781 = smul.u32 16, %s37
          %p2782 = scmp.lt.s32.totalorder %s2781, 31
          %s2783 = scalar_select %p2782, %s2781, 31
          %s2784 = smul.addr %s2783, 4
          %s2785 = scalar_lea.vmem %s19, %s2784
        $region132: #{idec_forward.1} parent=127 // pred_fallthru
          _
        // Predicated region
        $region133: #{idec_forward.1} parent=127 // pred_check
          %p2786 = pneg %p490
        $region134: #{idec_forward.1} parent=127 // pred_check_branch
          %2788 = sbr.rel (%p2786) target = $region136
        $region135: #{idec_forward.1} parent=127 // pred_region
          %s2789 = smul.u32 16, %s37
          %p2790 = scmp.lt.s32.totalorder %s2789, 31
          %s2791 = scalar_select %p2790, %s2789, 31
          %s2792 = smul.addr %s2791, 8
          %s2793 = scalar_lea.vmem %s20, %s2792
        $region136: #{idec_forward.1} parent=127 // pred_fallthru
          _
        // Predicated region
        $region137: #{idec_forward.1} parent=127 // pred_check
          %p2794 = pneg %p516
        $region138: #{idec_forward.1} parent=127 // pred_check_branch
          %2796 = sbr.rel (%p2794) target = $region140
        $region139: #{idec_forward.1} parent=127 // pred_region
          %s2797 = smul.u32 16, %s37
          %p2798 = scmp.lt.s32.totalorder %s2797, 31
          %s2799 = scalar_select %p2798, %s2797, 31
          %s2800 = smul.addr %s2799, 8
          %s2801 = scalar_lea.vmem %s21, %s2800
        $region140: #{idec_forward.1} parent=127 // pred_fallthru
          _
      $region128: #{idec_forward.1} parent=5 // pred_fallthru
        _
    $region6: #{idec_forward.1} parent=1 // loop_footer
      %s35 = sadd.s32 1, %s31
    $region7: #{idec_forward.1} parent=1 // loop_footer_branch
      %30 = sbr.rel target = $region3
    $region8: #{idec_forward.1} parent=1 // loop_exit
      _
    %2802 = vsyncpa [#allocation3], 1
    %s2803 = scalar_lea.sflag [#allocation3], 1
    %2804 = vsyncpa %s2803, 1
    %2805 = vsyncpa [#allocation5], 1
    %2806 = vsyncpa [#allocation8], 1

</llo_original>
